<compile_context>
chip_gen: v6e
topology: v6e:2x2x1
jax: 0.10.0
libtpu: 0.0.40
codegen_flags: <defaults>
</compile_context>

<pallas_src>
import functools

import jax
import jax.numpy as jnp
from jax.experimental import pallas as pl
from jax.experimental.pallas import tpu as pltpu


def _round_up(n, m):
    return ((n + m - 1) // m) * m


def qnet_kernel(x_ref,
                w1_ref, b1_ref,
                w2_ref, b2_ref,
                w3_ref, b3_ref,
                w4_ref, b4_ref,
                o_ref):
    """One batch tile of the fused 4-layer MLP (bf16 matmuls, f32 accumulation)."""
    h = jnp.dot(x_ref[...], w1_ref[...],
                preferred_element_type=jnp.float32) + b1_ref[...]
    h = jnp.maximum(h, 0.0).astype(jnp.bfloat16)

    h = jnp.dot(h, w2_ref[...],
                preferred_element_type=jnp.float32) + b2_ref[...]
    h = jnp.maximum(h, 0.0).astype(jnp.bfloat16)

    h = jnp.dot(h, w3_ref[...],
                preferred_element_type=jnp.float32) + b3_ref[...]
    h = jnp.maximum(h, 0.0).astype(jnp.bfloat16)

    h = jnp.dot(h, w4_ref[...],
                preferred_element_type=jnp.float32) + b4_ref[...]
    o_ref[...] = h.astype(o_ref.dtype)


def prepare_params(params_f32, action_dim):
    """Cast weights to bf16 and pad the last layer's output dim to 128 lanes.

    Biases stay f32 (tiny, added after the f32 accumulation)."""
    n_pad = _round_up(action_dim, 128)
    kp = {}
    for i in (1, 2, 3, 4):
        w = params_f32[f"w{i}"]
        b = params_f32[f"b{i}"]
        if i == 4 and w.shape[1] != n_pad:
            w = jnp.pad(w, ((0, 0), (0, n_pad - w.shape[1])))
            b = jnp.pad(b, ((0, 0), (0, n_pad - b.shape[1])))
        kp[f"w{i}"] = w.astype(jnp.bfloat16)
        kp[f"b{i}"] = b.astype(jnp.float32)
    return kp


@functools.partial(jax.jit, static_argnames=("action_dim", "tb"))
def qnet_forward(x, kparams, *, action_dim, tb=256):
    """Run the fused QNet kernel.

    x:        (B, state_dim) float32
    kparams:  output of prepare_params (bf16 weights, f32 biases, padded w4/b4)
    returns:  (B, action_dim) float32
    """
    B, state_dim = x.shape
    h1 = kparams["w1"].shape[1]
    h2 = kparams["w2"].shape[1]
    h3 = kparams["w3"].shape[1]
    n_pad = kparams["w4"].shape[1]

    # Batch tile: >=16 (bf16 sublane packing), <= tb (256 fills MXU rows on
    # v6e/v7x; still fine on v5e's 128-wide MXU).
    tb_eff = min(tb, _round_up(B, 16))
    b_pad = _round_up(B, tb_eff)

    x_p = x if b_pad == B else jnp.pad(x, ((0, b_pad - B), (0, 0)))
    x_p = x_p.astype(jnp.bfloat16)

    def resident(arr):
        # Whole-array block, same block index every grid step -> fetched once
        # and kept VMEM-resident across all batch tiles.
        return pl.BlockSpec(arr.shape, lambda i: (0, 0))

    operands = (
        x_p,
        kparams["w1"], kparams["b1"],
        kparams["w2"], kparams["b2"],
        kparams["w3"], kparams["b3"],
        kparams["w4"], kparams["b4"],
    )

    in_specs = [pl.BlockSpec((tb_eff, state_dim), lambda i: (i, 0))]
    in_specs += [resident(op) for op in operands[1:]]
    out_spec = pl.BlockSpec((tb_eff, n_pad), lambda i: (i, 0))

    flops = 2 * b_pad * (state_dim * h1 + h1 * h2 + h2 * h3 + h3 * n_pad)
    bytes_accessed = (
        x_p.size * 2
        + sum(kparams[f"w{i}"].size * 2 for i in (1, 2, 3, 4))
        + sum(kparams[f"b{i}"].size * 4 for i in (1, 2, 3, 4))
        + b_pad * n_pad * 4
    )

    out = pl.pallas_call(
        qnet_kernel,
        out_shape=jax.ShapeDtypeStruct((b_pad, n_pad), jnp.float32),
        grid=(b_pad // tb_eff,),
        in_specs=in_specs,
        out_specs=out_spec,
        compiler_params=pltpu.CompilerParams(
            dimension_semantics=("parallel",)),
        cost_estimate=pl.CostEstimate(
            flops=flops, transcendentals=0, bytes_accessed=bytes_accessed),
    )(*operands)

    return out[:B, :action_dim]


def init_qnet_params(key, state_dim, action_dim):
    """Deterministic init mimicking PyTorch nn.Linear defaults
    (uniform(-1/sqrt(fan_in), 1/sqrt(fan_in)) for both weight and bias).
    Weights stored (in, out) so the kernel computes y = x @ W + b."""
    dims = [(state_dim, 1024), (1024, 512), (512, 256), (256, action_dim)]
    params = {}
    for i, (fan_in, fan_out) in enumerate(dims, start=1):
        key, kw, kb = jax.random.split(key, 3)
        bound = 1.0 / jnp.sqrt(jnp.float32(fan_in))
        params[f"w{i}"] = jax.random.uniform(
            kw, (fan_in, fan_out), jnp.float32, -bound, bound)
        params[f"b{i}"] = jax.random.uniform(
            kb, (1, fan_out), jnp.float32, -bound, bound)
    return params


def qnet_reference_f32(x, p):
    """Pure-JAX f32 reference (matches the PyTorch module)."""
    h = jnp.maximum(x @ p["w1"] + p["b1"], 0.0)
    h = jnp.maximum(h @ p["w2"] + p["b2"], 0.0)
    h = jnp.maximum(h @ p["w3"] + p["b3"], 0.0)
    return h @ p["w4"] + p["b4"]


def qnet_reference_bf16(x, p):
    """Reference that mirrors the kernel's bf16 casts with f32 accumulation."""
    def mm(a, w):
        return jnp.dot(a.astype(jnp.bfloat16), w.astype(jnp.bfloat16),
                       preferred_element_type=jnp.float32)
    h = jnp.maximum(mm(x, p["w1"]) + p["b1"], 0.0).astype(jnp.bfloat16)
    h = jnp.maximum(mm(h, p["w2"]) + p["b2"], 0.0).astype(jnp.bfloat16)
    h = jnp.maximum(mm(h, p["w3"]) + p["b3"], 0.0).astype(jnp.bfloat16)
    return mm(h, p["w4"]) + p["b4"]


if __name__ == "__main__":
    key = jax.random.PRNGKey(0)
    batch = 8
    state_dim = 32
    action_dim = 8

    key, kx, kp = jax.random.split(key, 3)
    x = jax.random.normal(kx, (batch, state_dim), jnp.float32)
    params = init_qnet_params(kp, state_dim, action_dim)
    kparams = prepare_params(params, action_dim)

    out = qnet_forward(x, kparams, action_dim=action_dim)
    out = jax.block_until_ready(out)
    assert out.shape == (batch, action_dim)

    ref_bf16 = qnet_reference_bf16(x, params)
    ref_f32 = qnet_reference_f32(x, params)
    assert jnp.allclose(out, ref_bf16, atol=2e-2, rtol=2e-2), \
        "mismatch vs bf16-matched reference"
    assert jnp.allclose(out, ref_f32, atol=5e-2, rtol=5e-2), \
        "mismatch vs f32 reference"

    print("KERNEL_OK")
</pallas_src>

<mosaic_0001>
module attributes {stable_mosaic.version = 11 : i64} {
  func.func @qnet_kernel(%arg0: i32, %arg1: memref<16x32xbf16, #tpu.memory_space<vmem>>, %arg2: memref<32x1024xbf16, #tpu.memory_space<vmem>>, %arg3: memref<1x1024xf32, #tpu.memory_space<vmem>>, %arg4: memref<1024x512xbf16, #tpu.memory_space<vmem>>, %arg5: memref<1x512xf32, #tpu.memory_space<vmem>>, %arg6: memref<512x256xbf16, #tpu.memory_space<vmem>>, %arg7: memref<1x256xf32, #tpu.memory_space<vmem>>, %arg8: memref<256x128xbf16, #tpu.memory_space<vmem>>, %arg9: memref<1x128xf32, #tpu.memory_space<vmem>>, %arg10: memref<16x128xf32, #tpu.memory_space<vmem>>) attributes {dimension_semantics = [#tpu.dimension_semantics<parallel>], iteration_bounds = array<i64: 1>, scalar_prefetch = 0 : i64, scratch_operands = 0 : i64, tpu.core_type = #tpu.core_type<tc>, window_params = [{transform_indices = @transform_0, window_bounds = array<i64: 16, 32>}, {pipeline_mode = #tpu.pipeline_mode<synchronous>, transform_indices = @transform_1, window_bounds = array<i64: 32, 1024>}, {pipeline_mode = #tpu.pipeline_mode<synchronous>, transform_indices = @transform_2, window_bounds = array<i64: 1, 1024>}, {pipeline_mode = #tpu.pipeline_mode<synchronous>, transform_indices = @transform_3, window_bounds = array<i64: 1024, 512>}, {pipeline_mode = #tpu.pipeline_mode<synchronous>, transform_indices = @transform_4, window_bounds = array<i64: 1, 512>}, {pipeline_mode = #tpu.pipeline_mode<synchronous>, transform_indices = @transform_5, window_bounds = array<i64: 512, 256>}, {pipeline_mode = #tpu.pipeline_mode<synchronous>, transform_indices = @transform_6, window_bounds = array<i64: 1, 256>}, {pipeline_mode = #tpu.pipeline_mode<synchronous>, transform_indices = @transform_7, window_bounds = array<i64: 256, 128>}, {pipeline_mode = #tpu.pipeline_mode<synchronous>, transform_indices = @transform_8, window_bounds = array<i64: 1, 128>}, {transform_indices = @transform_9, window_bounds = array<i64: 16, 128>}]} {
    %c0 = arith.constant 0 : index
    %c0_0 = arith.constant 0 : index
    %0 = vector.load %arg1[%c0, %c0_0] : memref<16x32xbf16, #tpu.memory_space<vmem>>, vector<16x32xbf16>
    %c0_1 = arith.constant 0 : index
    %c0_2 = arith.constant 0 : index
    %1 = vector.load %arg2[%c0_1, %c0_2] : memref<32x1024xbf16, #tpu.memory_space<vmem>>, vector<32x1024xbf16>
    %cst = arith.constant dense<0.000000e+00> : vector<16x1024xf32>
    %2 = tpu.matmul %0, %1, %cst {dimension_numbers = #tpu.dot_dimension_numbers<[1], [0], [0], [1], [0, 0, 1, 1], [], []>} : vector<16x32xbf16>, vector<32x1024xbf16>, vector<16x1024xf32> -> vector<16x1024xf32>
    %c0_3 = arith.constant 0 : index
    %c0_4 = arith.constant 0 : index
    %3 = vector.load %arg3[%c0_3, %c0_4] : memref<1x1024xf32, #tpu.memory_space<vmem>>, vector<1x1024xf32>
    %4 = vector.broadcast %3 : vector<1x1024xf32> to vector<16x1024xf32>
    %5 = arith.addf %2, %4 : vector<16x1024xf32>
    %cst_5 = arith.constant 0.000000e+00 : f32
    %6 = vector.broadcast %cst_5 : f32 to vector<16x1024xf32>
    %7 = arith.maximumf %5, %6 : vector<16x1024xf32>
    %8 = arith.truncf %7 : vector<16x1024xf32> to vector<16x1024xbf16>
    %c0_6 = arith.constant 0 : index
    %c0_7 = arith.constant 0 : index
    %9 = vector.load %arg4[%c0_6, %c0_7] : memref<1024x512xbf16, #tpu.memory_space<vmem>>, vector<1024x512xbf16>
    %cst_8 = arith.constant dense<0.000000e+00> : vector<16x512xf32>
    %10 = tpu.matmul %8, %9, %cst_8 {dimension_numbers = #tpu.dot_dimension_numbers<[1], [0], [0], [1], [0, 0, 1, 1], [], []>} : vector<16x1024xbf16>, vector<1024x512xbf16>, vector<16x512xf32> -> vector<16x512xf32>
    %c0_9 = arith.constant 0 : index
    %c0_10 = arith.constant 0 : index
    %11 = vector.load %arg5[%c0_9, %c0_10] : memref<1x512xf32, #tpu.memory_space<vmem>>, vector<1x512xf32>
    %12 = vector.broadcast %11 : vector<1x512xf32> to vector<16x512xf32>
    %13 = arith.addf %10, %12 : vector<16x512xf32>
    %cst_11 = arith.constant 0.000000e+00 : f32
    %14 = vector.broadcast %cst_11 : f32 to vector<16x512xf32>
    %15 = arith.maximumf %13, %14 : vector<16x512xf32>
    %16 = arith.truncf %15 : vector<16x512xf32> to vector<16x512xbf16>
    %c0_12 = arith.constant 0 : index
    %c0_13 = arith.constant 0 : index
    %17 = vector.load %arg6[%c0_12, %c0_13] : memref<512x256xbf16, #tpu.memory_space<vmem>>, vector<512x256xbf16>
    %cst_14 = arith.constant dense<0.000000e+00> : vector<16x256xf32>
    %18 = tpu.matmul %16, %17, %cst_14 {dimension_numbers = #tpu.dot_dimension_numbers<[1], [0], [0], [1], [0, 0, 1, 1], [], []>} : vector<16x512xbf16>, vector<512x256xbf16>, vector<16x256xf32> -> vector<16x256xf32>
    %c0_15 = arith.constant 0 : index
    %c0_16 = arith.constant 0 : index
    %19 = vector.load %arg7[%c0_15, %c0_16] : memref<1x256xf32, #tpu.memory_space<vmem>>, vector<1x256xf32>
    %20 = vector.broadcast %19 : vector<1x256xf32> to vector<16x256xf32>
    %21 = arith.addf %18, %20 : vector<16x256xf32>
    %cst_17 = arith.constant 0.000000e+00 : f32
    %22 = vector.broadcast %cst_17 : f32 to vector<16x256xf32>
    %23 = arith.maximumf %21, %22 : vector<16x256xf32>
    %24 = arith.truncf %23 : vector<16x256xf32> to vector<16x256xbf16>
    %c0_18 = arith.constant 0 : index
    %c0_19 = arith.constant 0 : index
    %25 = vector.load %arg8[%c0_18, %c0_19] : memref<256x128xbf16, #tpu.memory_space<vmem>>, vector<256x128xbf16>
    %cst_20 = arith.constant dense<0.000000e+00> : vector<16x128xf32>
    %26 = tpu.matmul %24, %25, %cst_20 {dimension_numbers = #tpu.dot_dimension_numbers<[1], [0], [0], [1], [0, 0, 1, 1], [], []>} : vector<16x256xbf16>, vector<256x128xbf16>, vector<16x128xf32> -> vector<16x128xf32>
    %c0_21 = arith.constant 0 : index
    %c0_22 = arith.constant 0 : index
    %27 = vector.load %arg9[%c0_21, %c0_22] : memref<1x128xf32, #tpu.memory_space<vmem>>, vector<1x128xf32>
    %28 = vector.broadcast %27 : vector<1x128xf32> to vector<16x128xf32>
    %29 = arith.addf %26, %28 : vector<16x128xf32>
    %c0_23 = arith.constant 0 : index
    %c0_24 = arith.constant 0 : index
    %30 = vector.load %arg10[%c0_23, %c0_24] : memref<16x128xf32, #tpu.memory_space<vmem>>, vector<16x128xf32>
    tpu.vector_store %arg10[%c0_23, %c0_24], %29 {strides = array<i32>} : memref<16x128xf32, #tpu.memory_space<vmem>>, vector<16x128xf32>,
    return
  }
  func.func @transform_0(%arg0: i32) -> (i32, i32) {
    %c0_i32 = arith.constant 0 : i32
    %c0_i32_0 = arith.constant 0 : i32
    return %arg0, %c0_i32 : i32, i32
  }
  func.func @transform_1(%arg0: i32) -> (i32, i32) {
    %c0_i32 = arith.constant 0 : i32
    %c0_i32_0 = arith.constant 0 : i32
    %c0_i32_1 = arith.constant 0 : i32
    return %c0_i32, %c0_i32_0 : i32, i32
  }
  func.func @transform_2(%arg0: i32) -> (i32, i32) {
    %c0_i32 = arith.constant 0 : i32
    %c0_i32_0 = arith.constant 0 : i32
    %c0_i32_1 = arith.constant 0 : i32
    return %c0_i32, %c0_i32_0 : i32, i32
  }
  func.func @transform_3(%arg0: i32) -> (i32, i32) {
    %c0_i32 = arith.constant 0 : i32
    %c0_i32_0 = arith.constant 0 : i32
    %c0_i32_1 = arith.constant 0 : i32
    return %c0_i32, %c0_i32_0 : i32, i32
  }
  func.func @transform_4(%arg0: i32) -> (i32, i32) {
    %c0_i32 = arith.constant 0 : i32
    %c0_i32_0 = arith.constant 0 : i32
    %c0_i32_1 = arith.constant 0 : i32
    return %c0_i32, %c0_i32_0 : i32, i32
  }
  func.func @transform_5(%arg0: i32) -> (i32, i32) {
    %c0_i32 = arith.constant 0 : i32
    %c0_i32_0 = arith.constant 0 : i32
    %c0_i32_1 = arith.constant 0 : i32
    return %c0_i32, %c0_i32_0 : i32, i32
  }
  func.func @transform_6(%arg0: i32) -> (i32, i32) {
    %c0_i32 = arith.constant 0 : i32
    %c0_i32_0 = arith.constant 0 : i32
    %c0_i32_1 = arith.constant 0 : i32
    return %c0_i32, %c0_i32_0 : i32, i32
  }
  func.func @transform_7(%arg0: i32) -> (i32, i32) {
    %c0_i32 = arith.constant 0 : i32
    %c0_i32_0 = arith.constant 0 : i32
    %c0_i32_1 = arith.constant 0 : i32
    return %c0_i32, %c0_i32_0 : i32, i32
  }
  func.func @transform_8(%arg0: i32) -> (i32, i32) {
    %c0_i32 = arith.constant 0 : i32
    %c0_i32_0 = arith.constant 0 : i32
    %c0_i32_1 = arith.constant 0 : i32
    return %c0_i32, %c0_i32_0 : i32, i32
  }
  func.func @transform_9(%arg0: i32) -> (i32, i32) {
    %c0_i32 = arith.constant 0 : i32
    %c0_i32_0 = arith.constant 0 : i32
    return %arg0, %c0_i32 : i32, i32
  }
}

</mosaic_0001>

<llo_original>
// kernel: qnet_forward.1
$region0: #{qnet_forward.1}
  #allocation0 [shape = 'u32[]', space=smem, size = 0x4, offset = 0x4, fixed_abs, tag = 'smem constant byte address 0x4 - core index']
  #allocation1 [shape = 'u32[144,128]{1,0:T(1,128)}', space=vmem, size = 0x12000, scoped, tag = 'internal scratch']
  %s0 = inlined_call_operand.vmem [shape: bf16[16,32], index: 0, kind: input, shape index: {}]
  %s1 = inlined_call_operand.hbm [shape: bf16[32,1024], index: 1, kind: input, shape index: {}]
  %s2 = inlined_call_operand.vmem [shape: f32[1,1024], index: 2, kind: input, shape index: {}]
  %s3 = inlined_call_operand.hbm [shape: bf16[1024,512], index: 3, kind: input, shape index: {}]
  %s4 = inlined_call_operand.vmem [shape: f32[1,512], index: 4, kind: input, shape index: {}]
  %s5 = inlined_call_operand.hbm [shape: bf16[512,256], index: 5, kind: input, shape index: {}]
  %s6 = inlined_call_operand.vmem [shape: f32[1,256], index: 6, kind: input, shape index: {}]
  %s7 = inlined_call_operand.hbm [shape: bf16[256,128], index: 7, kind: input, shape index: {}]
  %s8 = inlined_call_operand.vmem [shape: f32[1,128], index: 8, kind: input, shape index: {}]
  %s9 = inlined_call_operand.vmem [shape: f32[16,128], index: 9, kind: output, shape index: {}]
  %s10 = sld [smem:[#allocation0]]
  $region62: #{qnet_forward.1} parent=0
    _
  %s12 = ssub.s32 1, %s10
  %s13 = scalar_select 0, %s12, %s10
  $region1: #{qnet_forward.1} parent=0
    #allocation2 [shape = 'u8[65536]{0}', space=vmem, size = 0x10000, scoped, tag = 'input window, operand 1, single buffered']
    #allocation3 [shape = 's32[1]{0}', space=sflag, size = 0x4, scoped, tag = 'scoped memory for qnet_forward.1']
    #allocation4 [shape = 'u8[1048576]{0}', space=vmem, size = 0x100000, scoped, tag = 'input window, operand 3, single buffered']
    #allocation5 [shape = 's32[1]{0}', space=sflag, size = 0x4, scoped, tag = 'scoped memory for qnet_forward.1']
    #allocation6 [shape = 'u8[262144]{0}', space=vmem, size = 0x40000, scoped, tag = 'input window, operand 5, single buffered']
    #allocation7 [shape = 'u8[65536]{0}', space=vmem, size = 0x10000, scoped, tag = 'input window, operand 7, single buffered']
    #allocation8 [shape = 's32[1]{0}', space=sflag, size = 0x4, scoped, tag = 'scoped memory for qnet_forward.1']
    %14 = vsyncpa [#allocation3], 0
    %15 = vsyncpa [#allocation5], 0
    %16 = vsyncpa [#allocation8], 0
    // Predicated region
    $region2: #{qnet_forward.1} parent=1 // pred_check
      _
    $region3: #{qnet_forward.1} parent=1 // pred_check_branch
      %18 = sbr.rel (0) target = $region5
    $region4: #{qnet_forward.1} parent=1 // pred_region
      _
    $region5: #{qnet_forward.1} parent=1 // pred_fallthru
      _
    // Predicated region
    $region6: #{qnet_forward.1} parent=1 // pred_check
      _
    $region7: #{qnet_forward.1} parent=1 // pred_check_branch
      %20 = sbr.rel (0) target = $region9
    $region8: #{qnet_forward.1} parent=1 // pred_region
      %s22 = ssub.s32 2048, 2048
      %23 = vsyncadd [#allocation3], %s22
      %s24 = sshll.u32 [#allocation2], 4
      %s25 = int_to_ptr.vmem [resolvable:$true] %s24
      %30 = dma.hbm_to_vmem [thread:$0]  %s1, 2048, %s25, [#allocation3], 512, 512, 32
    $region9: #{qnet_forward.1} parent=1 // pred_fallthru
      _
    // Predicated region
    $region10: #{qnet_forward.1} parent=1 // pred_check
      _
    $region11: #{qnet_forward.1} parent=1 // pred_check_branch
      %32 = sbr.rel (0) target = $region13
    $region12: #{qnet_forward.1} parent=1 // pred_region
      _
    $region13: #{qnet_forward.1} parent=1 // pred_fallthru
      _
    // Predicated region
    $region14: #{qnet_forward.1} parent=1 // pred_check
      _
    $region15: #{qnet_forward.1} parent=1 // pred_check_branch
      %34 = sbr.rel (0) target = $region17
    $region16: #{qnet_forward.1} parent=1 // pred_region
      %s36 = ssub.s32 32768, 32768
      %37 = vsyncadd [#allocation5], %s36
      %s38 = sshll.u32 [#allocation4], 4
      %s39 = int_to_ptr.vmem [resolvable:$true] %s38
      %44 = dma.hbm_to_vmem [thread:$0]  %s3, 32768, %s39, [#allocation5], 256, 256, 16
    $region17: #{qnet_forward.1} parent=1 // pred_fallthru
      _
    // Predicated region
    $region18: #{qnet_forward.1} parent=1 // pred_check
      _
    $region19: #{qnet_forward.1} parent=1 // pred_check_branch
      %46 = sbr.rel (0) target = $region21
    $region20: #{qnet_forward.1} parent=1 // pred_region
      _
    $region21: #{qnet_forward.1} parent=1 // pred_fallthru
      _
    // Predicated region
    $region22: #{qnet_forward.1} parent=1 // pred_check
      _
    $region23: #{qnet_forward.1} parent=1 // pred_check_branch
      %48 = sbr.rel (0) target = $region25
    $region24: #{qnet_forward.1} parent=1 // pred_region
      %s50 = ssub.s32 8192, 8192
      %51 = vsyncadd [#allocation5], %s50
      %s52 = sshll.u32 [#allocation6], 4
      %s53 = int_to_ptr.vmem [resolvable:$true] %s52
      %58 = dma.hbm_to_vmem [thread:$0]  %s5, 8192, %s53, [#allocation5], 128, 128, 8
    $region25: #{qnet_forward.1} parent=1 // pred_fallthru
      _
    // Predicated region
    $region26: #{qnet_forward.1} parent=1 // pred_check
      _
    $region27: #{qnet_forward.1} parent=1 // pred_check_branch
      %60 = sbr.rel (0) target = $region29
    $region28: #{qnet_forward.1} parent=1 // pred_region
      _
    $region29: #{qnet_forward.1} parent=1 // pred_fallthru
      _
    // Predicated region
    $region30: #{qnet_forward.1} parent=1 // pred_check
      _
    $region31: #{qnet_forward.1} parent=1 // pred_check_branch
      %62 = sbr.rel (0) target = $region33
    $region32: #{qnet_forward.1} parent=1 // pred_region
      %s64 = ssub.s32 2048, 2048
      %65 = vsyncadd [#allocation8], %s64
      %s66 = sshll.u32 [#allocation7], 4
      %s67 = int_to_ptr.vmem [resolvable:$true] %s66
      %72 = dma.hbm_to_vmem [thread:$0]  %s7, 2048, %s67, [#allocation8], 64, 64, 4
    $region33: #{qnet_forward.1} parent=1 // pred_fallthru
      _
    // Predicated region
    $region34: #{qnet_forward.1} parent=1 // pred_check
      _
    $region35: #{qnet_forward.1} parent=1 // pred_check_branch
      %74 = sbr.rel (0) target = $region37
    $region36: #{qnet_forward.1} parent=1 // pred_region
      _
    $region37: #{qnet_forward.1} parent=1 // pred_fallthru
      _
    // Predicated region
    $region38: #{qnet_forward.1} parent=1 // pred_check
      _
    $region39: #{qnet_forward.1} parent=1 // pred_check_branch
      %76 = sbr.rel (0) target = $region41
    $region40: #{qnet_forward.1} parent=1 // pred_region
      %77 = dma.done [#allocation3], 2048
    $region41: #{qnet_forward.1} parent=1 // pred_fallthru
      _
    // Predicated region
    $region42: #{qnet_forward.1} parent=1 // pred_check
      _
    $region43: #{qnet_forward.1} parent=1 // pred_check_branch
      %79 = sbr.rel (0) target = $region45
    $region44: #{qnet_forward.1} parent=1 // pred_region
      %80 = dma.done [#allocation5], 32768
    $region45: #{qnet_forward.1} parent=1 // pred_fallthru
      _
    // Predicated region
    $region46: #{qnet_forward.1} parent=1 // pred_check
      _
    $region47: #{qnet_forward.1} parent=1 // pred_check_branch
      %82 = sbr.rel (0) target = $region49
    $region48: #{qnet_forward.1} parent=1 // pred_region
      %83 = dma.done [#allocation5], 8192
    $region49: #{qnet_forward.1} parent=1 // pred_fallthru
      _
    // Predicated region
    $region50: #{qnet_forward.1} parent=1 // pred_check
      _
    $region51: #{qnet_forward.1} parent=1 // pred_check_branch
      %85 = sbr.rel (0) target = $region53
    $region52: #{qnet_forward.1} parent=1 // pred_region
      %86 = dma.done [#allocation8], 2048
    $region53: #{qnet_forward.1} parent=1 // pred_fallthru
      _
    %v88 = vld [vmem:[%s0] sm:$0xf]
    %v89 = vld [vmem:[%s0 + $0x4] sm:$0xf]
    %v90 = vld [vmem:[#allocation2] sm:$0xff]
    %v91 = vld [vmem:[#allocation2 + $0x8] sm:$0xff]
    %v92 = vld [vmem:[#allocation2 + $0x10] sm:$0xff]
    %v93 = vld [vmem:[#allocation2 + $0x18] sm:$0xff]
    %v94 = vld [vmem:[#allocation2 + $0x20] sm:$0xff]
    %v95 = vld [vmem:[#allocation2 + $0x28] sm:$0xff]
    %v96 = vld [vmem:[#allocation2 + $0x30] sm:$0xff]
    %v97 = vld [vmem:[#allocation2 + $0x38] sm:$0xff]
    %v98 = vld [vmem:[#allocation2 + $0x40] sm:$0xff]
    %v99 = vld [vmem:[#allocation2 + $0x48] sm:$0xff]
    %v100 = vld [vmem:[#allocation2 + $0x50] sm:$0xff]
    %v101 = vld [vmem:[#allocation2 + $0x58] sm:$0xff]
    %v102 = vld [vmem:[#allocation2 + $0x60] sm:$0xff]
    %v103 = vld [vmem:[#allocation2 + $0x68] sm:$0xff]
    %v104 = vld [vmem:[#allocation2 + $0x70] sm:$0xff]
    %v105 = vld [vmem:[#allocation2 + $0x78] sm:$0xff]
    %v106 = vld [vmem:[%s2] sm:$0xff]
    %v108 = vlaneseq
    %v109 = vshrl.u32 %v108, 7
    %v110 = vsub.s32 0, %v109
    %v111 = vrot.slane %v106, %v110
    %v112 = vlaneseq
    %v113 = vshrl.u32 %v112, 7
    %v114 = vsub.s32 1, %v113
    %v115 = vrot.slane %v106, %v114
    %v116 = vlaneseq
    %v117 = vshrl.u32 %v116, 7
    %v118 = vsub.s32 2, %v117
    %v119 = vrot.slane %v106, %v118
    %v120 = vlaneseq
    %v121 = vshrl.u32 %v120, 7
    %v122 = vsub.s32 3, %v121
    %v123 = vrot.slane %v106, %v122
    %v124 = vlaneseq
    %v125 = vshrl.u32 %v124, 7
    %v126 = vsub.s32 4, %v125
    %v127 = vrot.slane %v106, %v126
    %v128 = vlaneseq
    %v129 = vshrl.u32 %v128, 7
    %v130 = vsub.s32 5, %v129
    %v131 = vrot.slane %v106, %v130
    %v132 = vlaneseq
    %v133 = vshrl.u32 %v132, 7
    %v134 = vsub.s32 6, %v133
    %v135 = vrot.slane %v106, %v134
    %v136 = vlaneseq
    %v137 = vshrl.u32 %v136, 7
    %v138 = vsub.s32 7, %v137
    %v139 = vrot.slane %v106, %v138
    %v150 = vunpack.c.l.b16 %v88
    %v151 = vunpack.c.l.b16 %v89
    %v152 = vpack.c.b16 %v151, %v150
    %v169 = vunpack.c.l.b16 %v90
    %v170 = vunpack.c.h.b16 %v90
    %v171 = vunpack.c.l.b16 %v91
    %v172 = vunpack.c.h.b16 %v91
    %v173 = vunpack.c.l.b16 %v92
    %v174 = vunpack.c.h.b16 %v92
    %v175 = vunpack.c.l.b16 %v93
    %v176 = vunpack.c.h.b16 %v93
    %v177 = vunpack.c.l.b16 %v94
    %v178 = vunpack.c.h.b16 %v94
    %v179 = vunpack.c.l.b16 %v95
    %v180 = vunpack.c.h.b16 %v95
    %v181 = vunpack.c.l.b16 %v96
    %v182 = vunpack.c.h.b16 %v96
    %v183 = vunpack.c.l.b16 %v97
    %v184 = vunpack.c.h.b16 %v97
    %v185 = vunpack.c.l.b16 %v98
    %v186 = vunpack.c.h.b16 %v98
    %v187 = vunpack.c.l.b16 %v99
    %v188 = vunpack.c.h.b16 %v99
    %v189 = vunpack.c.l.b16 %v100
    %v190 = vunpack.c.h.b16 %v100
    %v191 = vunpack.c.l.b16 %v101
    %v192 = vunpack.c.h.b16 %v101
    %v193 = vunpack.c.l.b16 %v102
    %v194 = vunpack.c.h.b16 %v102
    %v195 = vunpack.c.l.b16 %v103
    %v196 = vunpack.c.h.b16 %v103
    %v197 = vunpack.c.l.b16 %v104
    %v198 = vunpack.c.h.b16 %v104
    %v199 = vunpack.c.l.b16 %v105
    %v200 = vunpack.c.h.b16 %v105
    %v201 = vpack.c.b16 %v177, %v169
    %v202 = vpack.c.b16 %v178, %v170
    %v203 = vpack.c.b16 %v179, %v171
    %v204 = vpack.c.b16 %v180, %v172
    %v205 = vpack.c.b16 %v181, %v173
    %v206 = vpack.c.b16 %v182, %v174
    %v207 = vpack.c.b16 %v183, %v175
    %v208 = vpack.c.b16 %v184, %v176
    %v209 = vpack.c.b16 %v193, %v185
    %v210 = vpack.c.b16 %v194, %v186
    %v211 = vpack.c.b16 %v195, %v187
    %v212 = vpack.c.b16 %v196, %v188
    %v213 = vpack.c.b16 %v197, %v189
    %v214 = vpack.c.b16 %v198, %v190
    %v215 = vpack.c.b16 %v199, %v191
    %v216 = vpack.c.b16 %v200, %v192
    %vm233 = vcmask 261120
    %v235 = vsel %vm233, %v152, 0
    %237 = vmatprep.subr.bf16.mxu0 0
    %238 = vmatpush1.bf16.msra.mxu0 0
    %239 = vmatprep.subr.bf16.mxu0 0
    %240 = vmatpush1.bf16.msra.mxu0 0
    %241 = vmatprep.subr.bf16.mxu0 0
    %242 = vmatpush1.bf16.msra.mxu0 0
    %243 = vmatprep.subr.bf16.mxu0 0
    %244 = vmatpush1.bf16.msra.mxu0 0
    %245 = vmatprep.subr.bf16.mxu0 0
    %246 = vmatpush1.bf16.msra.mxu0 0
    %247 = vmatprep.subr.bf16.mxu0 0
    %248 = vmatpush1.bf16.msra.mxu0 0
    %249 = vmatprep.subr.bf16.mxu0 %v210
    %250 = vmatpush1.bf16.msra.mxu0 %v209
    %251 = vmatprep.subr.bf16.mxu0 %v202
    %252 = vmatpush1.bf16.msra.mxu0 %v201
    %253 = vmatprep.subr.bf16.mxu0 0
    %254 = vmatpush2.bf16.msra.mxu0 0
    %255 = vmatprep.subr.bf16.mxu0 0
    %256 = vmatpush2.bf16.msra.mxu0 0
    %257 = vmatprep.subr.bf16.mxu0 0
    %258 = vmatpush2.bf16.msra.mxu0 0
    %259 = vmatprep.subr.bf16.mxu0 0
    %260 = vmatpush2.bf16.msra.mxu0 0
    %261 = vmatprep.subr.bf16.mxu0 0
    %262 = vmatpush2.bf16.msra.mxu0 0
    %263 = vmatprep.subr.bf16.mxu0 0
    %264 = vmatpush2.bf16.msra.mxu0 0
    %265 = vmatprep.subr.bf16.mxu0 0
    %266 = vmatpush2.bf16.msra.mxu0 0
    %267 = vmatprep.subr.bf16.mxu0 0
    %268 = vmatpush2.bf16.msra.mxu0 0
    %269 = vmatprep.mubr.bf16.mxu0 0
    %270 = vmatmul.mubr.bf16.gmra.mxu0 %v235
    %v271 = vpop.f32.mrf.mxu0
    %v272 = vadd.f32 %v111, %v271
    %v273 = vpop.f32.mrf.mxu0
    %v274 = vadd.f32 %v115, %v273
    %v275 = vpop.f32.mrf.mxu0
    %v276 = vadd.f32 %v111, %v275
    %v277 = vpop.f32.mrf.mxu0
    %v278 = vadd.f32 %v115, %v277
    %279 = vdwg.mxu0
    %280 = vmatprep.subr.bf16.mxu0 0
    %281 = vmatpush1.bf16.msra.mxu0 0
    %282 = vmatprep.subr.bf16.mxu0 0
    %283 = vmatpush1.bf16.msra.mxu0 0
    %284 = vmatprep.subr.bf16.mxu0 0
    %285 = vmatpush1.bf16.msra.mxu0 0
    %286 = vmatprep.subr.bf16.mxu0 0
    %287 = vmatpush1.bf16.msra.mxu0 0
    %288 = vmatprep.subr.bf16.mxu0 0
    %289 = vmatpush1.bf16.msra.mxu0 0
    %290 = vmatprep.subr.bf16.mxu0 0
    %291 = vmatpush1.bf16.msra.mxu0 0
    %292 = vmatprep.subr.bf16.mxu0 %v212
    %293 = vmatpush1.bf16.msra.mxu0 %v211
    %294 = vmatprep.subr.bf16.mxu0 %v204
    %295 = vmatpush1.bf16.msra.mxu0 %v203
    %296 = vmatprep.subr.bf16.mxu0 0
    %297 = vmatpush2.bf16.msra.mxu0 0
    %298 = vmatprep.subr.bf16.mxu0 0
    %299 = vmatpush2.bf16.msra.mxu0 0
    %300 = vmatprep.subr.bf16.mxu0 0
    %301 = vmatpush2.bf16.msra.mxu0 0
    %302 = vmatprep.subr.bf16.mxu0 0
    %303 = vmatpush2.bf16.msra.mxu0 0
    %304 = vmatprep.subr.bf16.mxu0 0
    %305 = vmatpush2.bf16.msra.mxu0 0
    %306 = vmatprep.subr.bf16.mxu0 0
    %307 = vmatpush2.bf16.msra.mxu0 0
    %308 = vmatprep.subr.bf16.mxu0 0
    %309 = vmatpush2.bf16.msra.mxu0 0
    %310 = vmatprep.subr.bf16.mxu0 0
    %311 = vmatpush2.bf16.msra.mxu0 0
    %312 = vmatprep.mubr.bf16.mxu0 0
    %313 = vmatmul.mubr.bf16.gmra.mxu0 %v235
    %v314 = vpop.f32.mrf.mxu0
    %v315 = vadd.f32 %v119, %v314
    %v316 = vpop.f32.mrf.mxu0
    %v317 = vadd.f32 %v123, %v316
    %v318 = vpop.f32.mrf.mxu0
    %v319 = vadd.f32 %v119, %v318
    %v320 = vpop.f32.mrf.mxu0
    %v321 = vadd.f32 %v123, %v320
    %322 = vdwg.mxu0
    %323 = vmatprep.subr.bf16.mxu0 0
    %324 = vmatpush1.bf16.msra.mxu0 0
    %325 = vmatprep.subr.bf16.mxu0 0
    %326 = vmatpush1.bf16.msra.mxu0 0
    %327 = vmatprep.subr.bf16.mxu0 0
    %328 = vmatpush1.bf16.msra.mxu0 0
    %329 = vmatprep.subr.bf16.mxu0 0
    %330 = vmatpush1.bf16.msra.mxu0 0
    %331 = vmatprep.subr.bf16.mxu0 0
    %332 = vmatpush1.bf16.msra.mxu0 0
    %333 = vmatprep.subr.bf16.mxu0 0
    %334 = vmatpush1.bf16.msra.mxu0 0
    %335 = vmatprep.subr.bf16.mxu0 %v214
    %336 = vmatpush1.bf16.msra.mxu0 %v213
    %337 = vmatprep.subr.bf16.mxu0 %v206
    %338 = vmatpush1.bf16.msra.mxu0 %v205
    %339 = vmatprep.subr.bf16.mxu0 0
    %340 = vmatpush2.bf16.msra.mxu0 0
    %341 = vmatprep.subr.bf16.mxu0 0
    %342 = vmatpush2.bf16.msra.mxu0 0
    %343 = vmatprep.subr.bf16.mxu0 0
    %344 = vmatpush2.bf16.msra.mxu0 0
    %345 = vmatprep.subr.bf16.mxu0 0
    %346 = vmatpush2.bf16.msra.mxu0 0
    %347 = vmatprep.subr.bf16.mxu0 0
    %348 = vmatpush2.bf16.msra.mxu0 0
    %349 = vmatprep.subr.bf16.mxu0 0
    %350 = vmatpush2.bf16.msra.mxu0 0
    %351 = vmatprep.subr.bf16.mxu0 0
    %352 = vmatpush2.bf16.msra.mxu0 0
    %353 = vmatprep.subr.bf16.mxu0 0
    %354 = vmatpush2.bf16.msra.mxu0 0
    %355 = vmatprep.mubr.bf16.mxu0 0
    %356 = vmatmul.mubr.bf16.gmra.mxu0 %v235
    %v357 = vpop.f32.mrf.mxu0
    %v358 = vadd.f32 %v127, %v357
    %v359 = vpop.f32.mrf.mxu0
    %v360 = vadd.f32 %v131, %v359
    %v361 = vpop.f32.mrf.mxu0
    %v362 = vadd.f32 %v127, %v361
    %v363 = vpop.f32.mrf.mxu0
    %v364 = vadd.f32 %v131, %v363
    %365 = vdwg.mxu0
    %366 = vmatprep.subr.bf16.mxu0 0
    %367 = vmatpush1.bf16.msra.mxu0 0
    %368 = vmatprep.subr.bf16.mxu0 0
    %369 = vmatpush1.bf16.msra.mxu0 0
    %370 = vmatprep.subr.bf16.mxu0 0
    %371 = vmatpush1.bf16.msra.mxu0 0
    %372 = vmatprep.subr.bf16.mxu0 0
    %373 = vmatpush1.bf16.msra.mxu0 0
    %374 = vmatprep.subr.bf16.mxu0 0
    %375 = vmatpush1.bf16.msra.mxu0 0
    %376 = vmatprep.subr.bf16.mxu0 0
    %377 = vmatpush1.bf16.msra.mxu0 0
    %378 = vmatprep.subr.bf16.mxu0 %v216
    %379 = vmatpush1.bf16.msra.mxu0 %v215
    %380 = vmatprep.subr.bf16.mxu0 %v208
    %381 = vmatpush1.bf16.msra.mxu0 %v207
    %382 = vmatprep.subr.bf16.mxu0 0
    %383 = vmatpush2.bf16.msra.mxu0 0
    %384 = vmatprep.subr.bf16.mxu0 0
    %385 = vmatpush2.bf16.msra.mxu0 0
    %386 = vmatprep.subr.bf16.mxu0 0
    %387 = vmatpush2.bf16.msra.mxu0 0
    %388 = vmatprep.subr.bf16.mxu0 0
    %389 = vmatpush2.bf16.msra.mxu0 0
    %390 = vmatprep.subr.bf16.mxu0 0
    %391 = vmatpush2.bf16.msra.mxu0 0
    %392 = vmatprep.subr.bf16.mxu0 0
    %393 = vmatpush2.bf16.msra.mxu0 0
    %394 = vmatprep.subr.bf16.mxu0 0
    %395 = vmatpush2.bf16.msra.mxu0 0
    %396 = vmatprep.subr.bf16.mxu0 0
    %397 = vmatpush2.bf16.msra.mxu0 0
    %398 = vmatprep.mubr.bf16.mxu0 0
    %399 = vmatmul.mubr.bf16.gmra.mxu0 %v235
    %v400 = vpop.f32.mrf.mxu0
    %v401 = vadd.f32 %v135, %v400
    %v402 = vpop.f32.mrf.mxu0
    %v403 = vadd.f32 %v139, %v402
    %v404 = vpop.f32.mrf.mxu0
    %v405 = vadd.f32 %v135, %v404
    %v406 = vpop.f32.mrf.mxu0
    %v407 = vadd.f32 %v139, %v406
    %408 = vdwg.mxu0
    %v409 = vmax.f32 %v272, 0.0
    %v410 = vmax.f32 %v274, 0.0
    %v411 = vmax.f32 %v315, 0.0
    %v412 = vmax.f32 %v317, 0.0
    %v413 = vmax.f32 %v358, 0.0
    %v414 = vmax.f32 %v360, 0.0
    %v415 = vmax.f32 %v401, 0.0
    %v416 = vmax.f32 %v403, 0.0
    %v417 = vmax.f32 %v276, 0.0
    %v418 = vmax.f32 %v278, 0.0
    %v419 = vmax.f32 %v319, 0.0
    %v420 = vmax.f32 %v321, 0.0
    %v421 = vmax.f32 %v362, 0.0
    %v422 = vmax.f32 %v364, 0.0
    %v423 = vmax.f32 %v405, 0.0
    %v424 = vmax.f32 %v407, 0.0
    %v425 = vpack.c.bf16 %v417, %v409
    %v426 = vpack.c.bf16 %v418, %v410
    %v427 = vpack.c.bf16 %v419, %v411
    %v428 = vpack.c.bf16 %v420, %v412
    %v429 = vpack.c.bf16 %v421, %v413
    %v430 = vpack.c.bf16 %v422, %v414
    %v431 = vpack.c.bf16 %v423, %v415
    %v432 = vpack.c.bf16 %v424, %v416
    %v433 = vld [vmem:[#allocation4] sm:$0xff]
    %v434 = vld [vmem:[#allocation4 + $0x8] sm:$0xff]
    %v435 = vld [vmem:[#allocation4 + $0x10] sm:$0xff]
    %v436 = vld [vmem:[#allocation4 + $0x18] sm:$0xff]
    %v437 = vld [vmem:[#allocation4 + $0x20] sm:$0xff]
    %v438 = vld [vmem:[#allocation4 + $0x28] sm:$0xff]
    %v439 = vld [vmem:[#allocation4 + $0x30] sm:$0xff]
    %v440 = vld [vmem:[#allocation4 + $0x38] sm:$0xff]
    %v441 = vld [vmem:[#allocation4 + $0x40] sm:$0xff]
    %v442 = vld [vmem:[#allocation4 + $0x48] sm:$0xff]
    %v443 = vld [vmem:[#allocation4 + $0x50] sm:$0xff]
    %v444 = vld [vmem:[#allocation4 + $0x58] sm:$0xff]
    %v445 = vld [vmem:[#allocation4 + $0x60] sm:$0xff]
    %v446 = vld [vmem:[#allocation4 + $0x68] sm:$0xff]
    %v447 = vld [vmem:[#allocation4 + $0x70] sm:$0xff]
    %v448 = vld [vmem:[#allocation4 + $0x78] sm:$0xff]
    %v449 = vld [vmem:[#allocation4 + $0x80] sm:$0xff]
    %v450 = vld [vmem:[#allocation4 + $0x88] sm:$0xff]
    %v451 = vld [vmem:[#allocation4 + $0x90] sm:$0xff]
    %v452 = vld [vmem:[#allocation4 + $0x98] sm:$0xff]
    %v453 = vld [vmem:[#allocation4 + $0xa0] sm:$0xff]
    %v454 = vld [vmem:[#allocation4 + $0xa8] sm:$0xff]
    %v455 = vld [vmem:[#allocation4 + $0xb0] sm:$0xff]
    %v456 = vld [vmem:[#allocation4 + $0xb8] sm:$0xff]
    %v457 = vld [vmem:[#allocation4 + $0xc0] sm:$0xff]
    %v458 = vld [vmem:[#allocation4 + $0xc8] sm:$0xff]
    %v459 = vld [vmem:[#allocation4 + $0xd0] sm:$0xff]
    %v460 = vld [vmem:[#allocation4 + $0xd8] sm:$0xff]
    %v461 = vld [vmem:[#allocation4 + $0xe0] sm:$0xff]
    %v462 = vld [vmem:[#allocation4 + $0xe8] sm:$0xff]
    %v463 = vld [vmem:[#allocation4 + $0xf0] sm:$0xff]
    %v464 = vld [vmem:[#allocation4 + $0xf8] sm:$0xff]
    %v465 = vld [vmem:[#allocation4 + $0x100] sm:$0xff]
    %v466 = vld [vmem:[#allocation4 + $0x108] sm:$0xff]
    %v467 = vld [vmem:[#allocation4 + $0x110] sm:$0xff]
    %v468 = vld [vmem:[#allocation4 + $0x118] sm:$0xff]
    %v469 = vld [vmem:[#allocation4 + $0x120] sm:$0xff]
    %v470 = vld [vmem:[#allocation4 + $0x128] sm:$0xff]
    %v471 = vld [vmem:[#allocation4 + $0x130] sm:$0xff]
    %v472 = vld [vmem:[#allocation4 + $0x138] sm:$0xff]
    %v473 = vld [vmem:[#allocation4 + $0x140] sm:$0xff]
    %v474 = vld [vmem:[#allocation4 + $0x148] sm:$0xff]
    %v475 = vld [vmem:[#allocation4 + $0x150] sm:$0xff]
    %v476 = vld [vmem:[#allocation4 + $0x158] sm:$0xff]
    %v477 = vld [vmem:[#allocation4 + $0x160] sm:$0xff]
    %v478 = vld [vmem:[#allocation4 + $0x168] sm:$0xff]
    %v479 = vld [vmem:[#allocation4 + $0x170] sm:$0xff]
    %v480 = vld [vmem:[#allocation4 + $0x178] sm:$0xff]
    %v481 = vld [vmem:[#allocation4 + $0x180] sm:$0xff]
    %v482 = vld [vmem:[#allocation4 + $0x188] sm:$0xff]
    %v483 = vld [vmem:[#allocation4 + $0x190] sm:$0xff]
    %v484 = vld [vmem:[#allocation4 + $0x198] sm:$0xff]
    %v485 = vld [vmem:[#allocation4 + $0x1a0] sm:$0xff]
    %v486 = vld [vmem:[#allocation4 + $0x1a8] sm:$0xff]
    %v487 = vld [vmem:[#allocation4 + $0x1b0] sm:$0xff]
    %v488 = vld [vmem:[#allocation4 + $0x1b8] sm:$0xff]
    %v489 = vld [vmem:[#allocation4 + $0x1c0] sm:$0xff]
    %v490 = vld [vmem:[#allocation4 + $0x1c8] sm:$0xff]
    %v491 = vld [vmem:[#allocation4 + $0x1d0] sm:$0xff]
    %v492 = vld [vmem:[#allocation4 + $0x1d8] sm:$0xff]
    %v493 = vld [vmem:[#allocation4 + $0x1e0] sm:$0xff]
    %v494 = vld [vmem:[#allocation4 + $0x1e8] sm:$0xff]
    %v495 = vld [vmem:[#allocation4 + $0x1f0] sm:$0xff]
    %v496 = vld [vmem:[#allocation4 + $0x1f8] sm:$0xff]
    %v497 = vld [vmem:[#allocation4 + $0x200] sm:$0xff]
    %v498 = vld [vmem:[#allocation4 + $0x208] sm:$0xff]
    %v499 = vld [vmem:[#allocation4 + $0x210] sm:$0xff]
    %v500 = vld [vmem:[#allocation4 + $0x218] sm:$0xff]
    %v501 = vld [vmem:[#allocation4 + $0x220] sm:$0xff]
    %v502 = vld [vmem:[#allocation4 + $0x228] sm:$0xff]
    %v503 = vld [vmem:[#allocation4 + $0x230] sm:$0xff]
    %v504 = vld [vmem:[#allocation4 + $0x238] sm:$0xff]
    %v505 = vld [vmem:[#allocation4 + $0x240] sm:$0xff]
    %v506 = vld [vmem:[#allocation4 + $0x248] sm:$0xff]
    %v507 = vld [vmem:[#allocation4 + $0x250] sm:$0xff]
    %v508 = vld [vmem:[#allocation4 + $0x258] sm:$0xff]
    %v509 = vld [vmem:[#allocation4 + $0x260] sm:$0xff]
    %v510 = vld [vmem:[#allocation4 + $0x268] sm:$0xff]
    %v511 = vld [vmem:[#allocation4 + $0x270] sm:$0xff]
    %v512 = vld [vmem:[#allocation4 + $0x278] sm:$0xff]
    %v513 = vld [vmem:[#allocation4 + $0x280] sm:$0xff]
    %v514 = vld [vmem:[#allocation4 + $0x288] sm:$0xff]
    %v515 = vld [vmem:[#allocation4 + $0x290] sm:$0xff]
    %v516 = vld [vmem:[#allocation4 + $0x298] sm:$0xff]
    %v517 = vld [vmem:[#allocation4 + $0x2a0] sm:$0xff]
    %v518 = vld [vmem:[#allocation4 + $0x2a8] sm:$0xff]
    %v519 = vld [vmem:[#allocation4 + $0x2b0] sm:$0xff]
    %v520 = vld [vmem:[#allocation4 + $0x2b8] sm:$0xff]
    %v521 = vld [vmem:[#allocation4 + $0x2c0] sm:$0xff]
    %v522 = vld [vmem:[#allocation4 + $0x2c8] sm:$0xff]
    %v523 = vld [vmem:[#allocation4 + $0x2d0] sm:$0xff]
    %v524 = vld [vmem:[#allocation4 + $0x2d8] sm:$0xff]
    %v525 = vld [vmem:[#allocation4 + $0x2e0] sm:$0xff]
    %v526 = vld [vmem:[#allocation4 + $0x2e8] sm:$0xff]
    %v527 = vld [vmem:[#allocation4 + $0x2f0] sm:$0xff]
    %v528 = vld [vmem:[#allocation4 + $0x2f8] sm:$0xff]
    %v529 = vld [vmem:[#allocation4 + $0x300] sm:$0xff]
    %v530 = vld [vmem:[#allocation4 + $0x308] sm:$0xff]
    %v531 = vld [vmem:[#allocation4 + $0x310] sm:$0xff]
    %v532 = vld [vmem:[#allocation4 + $0x318] sm:$0xff]
    %v533 = vld [vmem:[#allocation4 + $0x320] sm:$0xff]
    %v534 = vld [vmem:[#allocation4 + $0x328] sm:$0xff]
    %v535 = vld [vmem:[#allocation4 + $0x330] sm:$0xff]
    %v536 = vld [vmem:[#allocation4 + $0x338] sm:$0xff]
    %v537 = vld [vmem:[#allocation4 + $0x340] sm:$0xff]
    %v538 = vld [vmem:[#allocation4 + $0x348] sm:$0xff]
    %v539 = vld [vmem:[#allocation4 + $0x350] sm:$0xff]
    %v540 = vld [vmem:[#allocation4 + $0x358] sm:$0xff]
    %v541 = vld [vmem:[#allocation4 + $0x360] sm:$0xff]
    %v542 = vld [vmem:[#allocation4 + $0x368] sm:$0xff]
    %v543 = vld [vmem:[#allocation4 + $0x370] sm:$0xff]
    %v544 = vld [vmem:[#allocation4 + $0x378] sm:$0xff]
    %v545 = vld [vmem:[#allocation4 + $0x380] sm:$0xff]
    %v546 = vld [vmem:[#allocation4 + $0x388] sm:$0xff]
    %v547 = vld [vmem:[#allocation4 + $0x390] sm:$0xff]
    %v548 = vld [vmem:[#allocation4 + $0x398] sm:$0xff]
    %v549 = vld [vmem:[#allocation4 + $0x3a0] sm:$0xff]
    %v550 = vld [vmem:[#allocation4 + $0x3a8] sm:$0xff]
    %v551 = vld [vmem:[#allocation4 + $0x3b0] sm:$0xff]
    %v552 = vld [vmem:[#allocation4 + $0x3b8] sm:$0xff]
    %v553 = vld [vmem:[#allocation4 + $0x3c0] sm:$0xff]
    %v554 = vld [vmem:[#allocation4 + $0x3c8] sm:$0xff]
    %v555 = vld [vmem:[#allocation4 + $0x3d0] sm:$0xff]
    %v556 = vld [vmem:[#allocation4 + $0x3d8] sm:$0xff]
    %v557 = vld [vmem:[#allocation4 + $0x3e0] sm:$0xff]
    %v558 = vld [vmem:[#allocation4 + $0x3e8] sm:$0xff]
    %v559 = vld [vmem:[#allocation4 + $0x3f0] sm:$0xff]
    %v560 = vld [vmem:[#allocation4 + $0x3f8] sm:$0xff]
    %v561 = vld [vmem:[#allocation4 + $0x400] sm:$0xff]
    %v562 = vld [vmem:[#allocation4 + $0x408] sm:$0xff]
    %v563 = vld [vmem:[#allocation4 + $0x410] sm:$0xff]
    %v564 = vld [vmem:[#allocation4 + $0x418] sm:$0xff]
    %v565 = vld [vmem:[#allocation4 + $0x420] sm:$0xff]
    %v566 = vld [vmem:[#allocation4 + $0x428] sm:$0xff]
    %v567 = vld [vmem:[#allocation4 + $0x430] sm:$0xff]
    %v568 = vld [vmem:[#allocation4 + $0x438] sm:$0xff]
    %v569 = vld [vmem:[#allocation4 + $0x440] sm:$0xff]
    %v570 = vld [vmem:[#allocation4 + $0x448] sm:$0xff]
    %v571 = vld [vmem:[#allocation4 + $0x450] sm:$0xff]
    %v572 = vld [vmem:[#allocation4 + $0x458] sm:$0xff]
    %v573 = vld [vmem:[#allocation4 + $0x460] sm:$0xff]
    %v574 = vld [vmem:[#allocation4 + $0x468] sm:$0xff]
    %v575 = vld [vmem:[#allocation4 + $0x470] sm:$0xff]
    %v576 = vld [vmem:[#allocation4 + $0x478] sm:$0xff]
    %v577 = vld [vmem:[#allocation4 + $0x480] sm:$0xff]
    %v578 = vld [vmem:[#allocation4 + $0x488] sm:$0xff]
    %v579 = vld [vmem:[#allocation4 + $0x490] sm:$0xff]
    %v580 = vld [vmem:[#allocation4 + $0x498] sm:$0xff]
    %v581 = vld [vmem:[#allocation4 + $0x4a0] sm:$0xff]
    %v582 = vld [vmem:[#allocation4 + $0x4a8] sm:$0xff]
    %v583 = vld [vmem:[#allocation4 + $0x4b0] sm:$0xff]
    %v584 = vld [vmem:[#allocation4 + $0x4b8] sm:$0xff]
    %v585 = vld [vmem:[#allocation4 + $0x4c0] sm:$0xff]
    %v586 = vld [vmem:[#allocation4 + $0x4c8] sm:$0xff]
    %v587 = vld [vmem:[#allocation4 + $0x4d0] sm:$0xff]
    %v588 = vld [vmem:[#allocation4 + $0x4d8] sm:$0xff]
    %v589 = vld [vmem:[#allocation4 + $0x4e0] sm:$0xff]
    %v590 = vld [vmem:[#allocation4 + $0x4e8] sm:$0xff]
    %v591 = vld [vmem:[#allocation4 + $0x4f0] sm:$0xff]
    %v592 = vld [vmem:[#allocation4 + $0x4f8] sm:$0xff]
    %v593 = vld [vmem:[#allocation4 + $0x500] sm:$0xff]
    %v594 = vld [vmem:[#allocation4 + $0x508] sm:$0xff]
    %v595 = vld [vmem:[#allocation4 + $0x510] sm:$0xff]
    %v596 = vld [vmem:[#allocation4 + $0x518] sm:$0xff]
    %v597 = vld [vmem:[#allocation4 + $0x520] sm:$0xff]
    %v598 = vld [vmem:[#allocation4 + $0x528] sm:$0xff]
    %v599 = vld [vmem:[#allocation4 + $0x530] sm:$0xff]
    %v600 = vld [vmem:[#allocation4 + $0x538] sm:$0xff]
    %v601 = vld [vmem:[#allocation4 + $0x540] sm:$0xff]
    %v602 = vld [vmem:[#allocation4 + $0x548] sm:$0xff]
    %v603 = vld [vmem:[#allocation4 + $0x550] sm:$0xff]
    %v604 = vld [vmem:[#allocation4 + $0x558] sm:$0xff]
    %v605 = vld [vmem:[#allocation4 + $0x560] sm:$0xff]
    %v606 = vld [vmem:[#allocation4 + $0x568] sm:$0xff]
    %v607 = vld [vmem:[#allocation4 + $0x570] sm:$0xff]
    %v608 = vld [vmem:[#allocation4 + $0x578] sm:$0xff]
    %v609 = vld [vmem:[#allocation4 + $0x580] sm:$0xff]
    %v610 = vld [vmem:[#allocation4 + $0x588] sm:$0xff]
    %v611 = vld [vmem:[#allocation4 + $0x590] sm:$0xff]
    %v612 = vld [vmem:[#allocation4 + $0x598] sm:$0xff]
    %v613 = vld [vmem:[#allocation4 + $0x5a0] sm:$0xff]
    %v614 = vld [vmem:[#allocation4 + $0x5a8] sm:$0xff]
    %v615 = vld [vmem:[#allocation4 + $0x5b0] sm:$0xff]
    %v616 = vld [vmem:[#allocation4 + $0x5b8] sm:$0xff]
    %v617 = vld [vmem:[#allocation4 + $0x5c0] sm:$0xff]
    %v618 = vld [vmem:[#allocation4 + $0x5c8] sm:$0xff]
    %v619 = vld [vmem:[#allocation4 + $0x5d0] sm:$0xff]
    %v620 = vld [vmem:[#allocation4 + $0x5d8] sm:$0xff]
    %v621 = vld [vmem:[#allocation4 + $0x5e0] sm:$0xff]
    %v622 = vld [vmem:[#allocation4 + $0x5e8] sm:$0xff]
    %v623 = vld [vmem:[#allocation4 + $0x5f0] sm:$0xff]
    %v624 = vld [vmem:[#allocation4 + $0x5f8] sm:$0xff]
    %v625 = vld [vmem:[#allocation4 + $0x600] sm:$0xff]
    %v626 = vld [vmem:[#allocation4 + $0x608] sm:$0xff]
    %v627 = vld [vmem:[#allocation4 + $0x610] sm:$0xff]
    %v628 = vld [vmem:[#allocation4 + $0x618] sm:$0xff]
    %v629 = vld [vmem:[#allocation4 + $0x620] sm:$0xff]
    %v630 = vld [vmem:[#allocation4 + $0x628] sm:$0xff]
    %v631 = vld [vmem:[#allocation4 + $0x630] sm:$0xff]
    %v632 = vld [vmem:[#allocation4 + $0x638] sm:$0xff]
    %v633 = vld [vmem:[#allocation4 + $0x640] sm:$0xff]
    %v634 = vld [vmem:[#allocation4 + $0x648] sm:$0xff]
    %v635 = vld [vmem:[#allocation4 + $0x650] sm:$0xff]
    %v636 = vld [vmem:[#allocation4 + $0x658] sm:$0xff]
    %v637 = vld [vmem:[#allocation4 + $0x660] sm:$0xff]
    %v638 = vld [vmem:[#allocation4 + $0x668] sm:$0xff]
    %v639 = vld [vmem:[#allocation4 + $0x670] sm:$0xff]
    %v640 = vld [vmem:[#allocation4 + $0x678] sm:$0xff]
    %v641 = vld [vmem:[#allocation4 + $0x680] sm:$0xff]
    %v642 = vld [vmem:[#allocation4 + $0x688] sm:$0xff]
    %v643 = vld [vmem:[#allocation4 + $0x690] sm:$0xff]
    %v644 = vld [vmem:[#allocation4 + $0x698] sm:$0xff]
    %v645 = vld [vmem:[#allocation4 + $0x6a0] sm:$0xff]
    %v646 = vld [vmem:[#allocation4 + $0x6a8] sm:$0xff]
    %v647 = vld [vmem:[#allocation4 + $0x6b0] sm:$0xff]
    %v648 = vld [vmem:[#allocation4 + $0x6b8] sm:$0xff]
    %v649 = vld [vmem:[#allocation4 + $0x6c0] sm:$0xff]
    %v650 = vld [vmem:[#allocation4 + $0x6c8] sm:$0xff]
    %v651 = vld [vmem:[#allocation4 + $0x6d0] sm:$0xff]
    %v652 = vld [vmem:[#allocation4 + $0x6d8] sm:$0xff]
    %v653 = vld [vmem:[#allocation4 + $0x6e0] sm:$0xff]
    %v654 = vld [vmem:[#allocation4 + $0x6e8] sm:$0xff]
    %v655 = vld [vmem:[#allocation4 + $0x6f0] sm:$0xff]
    %v656 = vld [vmem:[#allocation4 + $0x6f8] sm:$0xff]
    %v657 = vld [vmem:[#allocation4 + $0x700] sm:$0xff]
    %v658 = vld [vmem:[#allocation4 + $0x708] sm:$0xff]
    %v659 = vld [vmem:[#allocation4 + $0x710] sm:$0xff]
    %v660 = vld [vmem:[#allocation4 + $0x718] sm:$0xff]
    %v661 = vld [vmem:[#allocation4 + $0x720] sm:$0xff]
    %v662 = vld [vmem:[#allocation4 + $0x728] sm:$0xff]
    %v663 = vld [vmem:[#allocation4 + $0x730] sm:$0xff]
    %v664 = vld [vmem:[#allocation4 + $0x738] sm:$0xff]
    %v665 = vld [vmem:[#allocation4 + $0x740] sm:$0xff]
    %v666 = vld [vmem:[#allocation4 + $0x748] sm:$0xff]
    %v667 = vld [vmem:[#allocation4 + $0x750] sm:$0xff]
    %v668 = vld [vmem:[#allocation4 + $0x758] sm:$0xff]
    %v669 = vld [vmem:[#allocation4 + $0x760] sm:$0xff]
    %v670 = vld [vmem:[#allocation4 + $0x768] sm:$0xff]
    %v671 = vld [vmem:[#allocation4 + $0x770] sm:$0xff]
    %v672 = vld [vmem:[#allocation4 + $0x778] sm:$0xff]
    %v673 = vld [vmem:[#allocation4 + $0x780] sm:$0xff]
    %v674 = vld [vmem:[#allocation4 + $0x788] sm:$0xff]
    %v675 = vld [vmem:[#allocation4 + $0x790] sm:$0xff]
    %v676 = vld [vmem:[#allocation4 + $0x798] sm:$0xff]
    %v677 = vld [vmem:[#allocation4 + $0x7a0] sm:$0xff]
    %v678 = vld [vmem:[#allocation4 + $0x7a8] sm:$0xff]
    %v679 = vld [vmem:[#allocation4 + $0x7b0] sm:$0xff]
    %v680 = vld [vmem:[#allocation4 + $0x7b8] sm:$0xff]
    %v681 = vld [vmem:[#allocation4 + $0x7c0] sm:$0xff]
    %v682 = vld [vmem:[#allocation4 + $0x7c8] sm:$0xff]
    %v683 = vld [vmem:[#allocation4 + $0x7d0] sm:$0xff]
    %v684 = vld [vmem:[#allocation4 + $0x7d8] sm:$0xff]
    %v685 = vld [vmem:[#allocation4 + $0x7e0] sm:$0xff]
    %v686 = vld [vmem:[#allocation4 + $0x7e8] sm:$0xff]
    %v687 = vld [vmem:[#allocation4 + $0x7f0] sm:$0xff]
    %v688 = vld [vmem:[#allocation4 + $0x7f8] sm:$0xff]
    %v689 = vld [vmem:[%s4] sm:$0xf]
    %v691 = vlaneseq
    %v692 = vshrl.u32 %v691, 7
    %v693 = vsub.s32 0, %v692
    %v694 = vrot.slane %v689, %v693
    %v695 = vlaneseq
    %v696 = vshrl.u32 %v695, 7
    %v697 = vsub.s32 1, %v696
    %v698 = vrot.slane %v689, %v697
    %v699 = vlaneseq
    %v700 = vshrl.u32 %v699, 7
    %v701 = vsub.s32 2, %v700
    %v702 = vrot.slane %v689, %v701
    %v703 = vlaneseq
    %v704 = vshrl.u32 %v703, 7
    %v705 = vsub.s32 3, %v704
    %v706 = vrot.slane %v689, %v705
    %v967 = vunpack.c.l.b16 %v433
    %v968 = vunpack.c.h.b16 %v433
    %v969 = vunpack.c.l.b16 %v434
    %v970 = vunpack.c.h.b16 %v434
    %v971 = vunpack.c.l.b16 %v435
    %v972 = vunpack.c.h.b16 %v435
    %v973 = vunpack.c.l.b16 %v436
    %v974 = vunpack.c.h.b16 %v436
    %v975 = vunpack.c.l.b16 %v437
    %v976 = vunpack.c.h.b16 %v437
    %v977 = vunpack.c.l.b16 %v438
    %v978 = vunpack.c.h.b16 %v438
    %v979 = vunpack.c.l.b16 %v439
    %v980 = vunpack.c.h.b16 %v439
    %v981 = vunpack.c.l.b16 %v440
    %v982 = vunpack.c.h.b16 %v440
    %v983 = vunpack.c.l.b16 %v441
    %v984 = vunpack.c.h.b16 %v441
    %v985 = vunpack.c.l.b16 %v442
    %v986 = vunpack.c.h.b16 %v442
    %v987 = vunpack.c.l.b16 %v443
    %v988 = vunpack.c.h.b16 %v443
    %v989 = vunpack.c.l.b16 %v444
    %v990 = vunpack.c.h.b16 %v444
    %v991 = vunpack.c.l.b16 %v445
    %v992 = vunpack.c.h.b16 %v445
    %v993 = vunpack.c.l.b16 %v446
    %v994 = vunpack.c.h.b16 %v446
    %v995 = vunpack.c.l.b16 %v447
    %v996 = vunpack.c.h.b16 %v447
    %v997 = vunpack.c.l.b16 %v448
    %v998 = vunpack.c.h.b16 %v448
    %v999 = vunpack.c.l.b16 %v449
    %v1000 = vunpack.c.h.b16 %v449
    %v1001 = vunpack.c.l.b16 %v450
    %v1002 = vunpack.c.h.b16 %v450
    %v1003 = vunpack.c.l.b16 %v451
    %v1004 = vunpack.c.h.b16 %v451
    %v1005 = vunpack.c.l.b16 %v452
    %v1006 = vunpack.c.h.b16 %v452
    %v1007 = vunpack.c.l.b16 %v453
    %v1008 = vunpack.c.h.b16 %v453
    %v1009 = vunpack.c.l.b16 %v454
    %v1010 = vunpack.c.h.b16 %v454
    %v1011 = vunpack.c.l.b16 %v455
    %v1012 = vunpack.c.h.b16 %v455
    %v1013 = vunpack.c.l.b16 %v456
    %v1014 = vunpack.c.h.b16 %v456
    %v1015 = vunpack.c.l.b16 %v457
    %v1016 = vunpack.c.h.b16 %v457
    %v1017 = vunpack.c.l.b16 %v458
    %v1018 = vunpack.c.h.b16 %v458
    %v1019 = vunpack.c.l.b16 %v459
    %v1020 = vunpack.c.h.b16 %v459
    %v1021 = vunpack.c.l.b16 %v460
    %v1022 = vunpack.c.h.b16 %v460
    %v1023 = vunpack.c.l.b16 %v461
    %v1024 = vunpack.c.h.b16 %v461
    %v1025 = vunpack.c.l.b16 %v462
    %v1026 = vunpack.c.h.b16 %v462
    %v1027 = vunpack.c.l.b16 %v463
    %v1028 = vunpack.c.h.b16 %v463
    %v1029 = vunpack.c.l.b16 %v464
    %v1030 = vunpack.c.h.b16 %v464
    %v1031 = vunpack.c.l.b16 %v465
    %v1032 = vunpack.c.h.b16 %v465
    %v1033 = vunpack.c.l.b16 %v466
    %v1034 = vunpack.c.h.b16 %v466
    %v1035 = vunpack.c.l.b16 %v467
    %v1036 = vunpack.c.h.b16 %v467
    %v1037 = vunpack.c.l.b16 %v468
    %v1038 = vunpack.c.h.b16 %v468
    %v1039 = vunpack.c.l.b16 %v469
    %v1040 = vunpack.c.h.b16 %v469
    %v1041 = vunpack.c.l.b16 %v470
    %v1042 = vunpack.c.h.b16 %v470
    %v1043 = vunpack.c.l.b16 %v471
    %v1044 = vunpack.c.h.b16 %v471
    %v1045 = vunpack.c.l.b16 %v472
    %v1046 = vunpack.c.h.b16 %v472
    %v1047 = vunpack.c.l.b16 %v473
    %v1048 = vunpack.c.h.b16 %v473
    %v1049 = vunpack.c.l.b16 %v474
    %v1050 = vunpack.c.h.b16 %v474
    %v1051 = vunpack.c.l.b16 %v475
    %v1052 = vunpack.c.h.b16 %v475
    %v1053 = vunpack.c.l.b16 %v476
    %v1054 = vunpack.c.h.b16 %v476
    %v1055 = vunpack.c.l.b16 %v477
    %v1056 = vunpack.c.h.b16 %v477
    %v1057 = vunpack.c.l.b16 %v478
    %v1058 = vunpack.c.h.b16 %v478
    %v1059 = vunpack.c.l.b16 %v479
    %v1060 = vunpack.c.h.b16 %v479
    %v1061 = vunpack.c.l.b16 %v480
    %v1062 = vunpack.c.h.b16 %v480
    %v1063 = vunpack.c.l.b16 %v481
    %v1064 = vunpack.c.h.b16 %v481
    %v1065 = vunpack.c.l.b16 %v482
    %v1066 = vunpack.c.h.b16 %v482
    %v1067 = vunpack.c.l.b16 %v483
    %v1068 = vunpack.c.h.b16 %v483
    %v1069 = vunpack.c.l.b16 %v484
    %v1070 = vunpack.c.h.b16 %v484
    %v1071 = vunpack.c.l.b16 %v485
    %v1072 = vunpack.c.h.b16 %v485
    %v1073 = vunpack.c.l.b16 %v486
    %v1074 = vunpack.c.h.b16 %v486
    %v1075 = vunpack.c.l.b16 %v487
    %v1076 = vunpack.c.h.b16 %v487
    %v1077 = vunpack.c.l.b16 %v488
    %v1078 = vunpack.c.h.b16 %v488
    %v1079 = vunpack.c.l.b16 %v489
    %v1080 = vunpack.c.h.b16 %v489
    %v1081 = vunpack.c.l.b16 %v490
    %v1082 = vunpack.c.h.b16 %v490
    %v1083 = vunpack.c.l.b16 %v491
    %v1084 = vunpack.c.h.b16 %v491
    %v1085 = vunpack.c.l.b16 %v492
    %v1086 = vunpack.c.h.b16 %v492
    %v1087 = vunpack.c.l.b16 %v493
    %v1088 = vunpack.c.h.b16 %v493
    %v1089 = vunpack.c.l.b16 %v494
    %v1090 = vunpack.c.h.b16 %v494
    %v1091 = vunpack.c.l.b16 %v495
    %v1092 = vunpack.c.h.b16 %v495
    %v1093 = vunpack.c.l.b16 %v496
    %v1094 = vunpack.c.h.b16 %v496
    %v1095 = vunpack.c.l.b16 %v497
    %v1096 = vunpack.c.h.b16 %v497
    %v1097 = vunpack.c.l.b16 %v498
    %v1098 = vunpack.c.h.b16 %v498
    %v1099 = vunpack.c.l.b16 %v499
    %v1100 = vunpack.c.h.b16 %v499
    %v1101 = vunpack.c.l.b16 %v500
    %v1102 = vunpack.c.h.b16 %v500
    %v1103 = vunpack.c.l.b16 %v501
    %v1104 = vunpack.c.h.b16 %v501
    %v1105 = vunpack.c.l.b16 %v502
    %v1106 = vunpack.c.h.b16 %v502
    %v1107 = vunpack.c.l.b16 %v503
    %v1108 = vunpack.c.h.b16 %v503
    %v1109 = vunpack.c.l.b16 %v504
    %v1110 = vunpack.c.h.b16 %v504
    %v1111 = vunpack.c.l.b16 %v505
    %v1112 = vunpack.c.h.b16 %v505
    %v1113 = vunpack.c.l.b16 %v506
    %v1114 = vunpack.c.h.b16 %v506
    %v1115 = vunpack.c.l.b16 %v507
    %v1116 = vunpack.c.h.b16 %v507
    %v1117 = vunpack.c.l.b16 %v508
    %v1118 = vunpack.c.h.b16 %v508
    %v1119 = vunpack.c.l.b16 %v509
    %v1120 = vunpack.c.h.b16 %v509
    %v1121 = vunpack.c.l.b16 %v510
    %v1122 = vunpack.c.h.b16 %v510
    %v1123 = vunpack.c.l.b16 %v511
    %v1124 = vunpack.c.h.b16 %v511
    %v1125 = vunpack.c.l.b16 %v512
    %v1126 = vunpack.c.h.b16 %v512
    %v1127 = vunpack.c.l.b16 %v513
    %v1128 = vunpack.c.h.b16 %v513
    %v1129 = vunpack.c.l.b16 %v514
    %v1130 = vunpack.c.h.b16 %v514
    %v1131 = vunpack.c.l.b16 %v515
    %v1132 = vunpack.c.h.b16 %v515
    %v1133 = vunpack.c.l.b16 %v516
    %v1134 = vunpack.c.h.b16 %v516
    %v1135 = vunpack.c.l.b16 %v517
    %v1136 = vunpack.c.h.b16 %v517
    %v1137 = vunpack.c.l.b16 %v518
    %v1138 = vunpack.c.h.b16 %v518
    %v1139 = vunpack.c.l.b16 %v519
    %v1140 = vunpack.c.h.b16 %v519
    %v1141 = vunpack.c.l.b16 %v520
    %v1142 = vunpack.c.h.b16 %v520
    %v1143 = vunpack.c.l.b16 %v521
    %v1144 = vunpack.c.h.b16 %v521
    %v1145 = vunpack.c.l.b16 %v522
    %v1146 = vunpack.c.h.b16 %v522
    %v1147 = vunpack.c.l.b16 %v523
    %v1148 = vunpack.c.h.b16 %v523
    %v1149 = vunpack.c.l.b16 %v524
    %v1150 = vunpack.c.h.b16 %v524
    %v1151 = vunpack.c.l.b16 %v525
    %v1152 = vunpack.c.h.b16 %v525
    %v1153 = vunpack.c.l.b16 %v526
    %v1154 = vunpack.c.h.b16 %v526
    %v1155 = vunpack.c.l.b16 %v527
    %v1156 = vunpack.c.h.b16 %v527
    %v1157 = vunpack.c.l.b16 %v528
    %v1158 = vunpack.c.h.b16 %v528
    %v1159 = vunpack.c.l.b16 %v529
    %v1160 = vunpack.c.h.b16 %v529
    %v1161 = vunpack.c.l.b16 %v530
    %v1162 = vunpack.c.h.b16 %v530
    %v1163 = vunpack.c.l.b16 %v531
    %v1164 = vunpack.c.h.b16 %v531
    %v1165 = vunpack.c.l.b16 %v532
    %v1166 = vunpack.c.h.b16 %v532
    %v1167 = vunpack.c.l.b16 %v533
    %v1168 = vunpack.c.h.b16 %v533
    %v1169 = vunpack.c.l.b16 %v534
    %v1170 = vunpack.c.h.b16 %v534
    %v1171 = vunpack.c.l.b16 %v535
    %v1172 = vunpack.c.h.b16 %v535
    %v1173 = vunpack.c.l.b16 %v536
    %v1174 = vunpack.c.h.b16 %v536
    %v1175 = vunpack.c.l.b16 %v537
    %v1176 = vunpack.c.h.b16 %v537
    %v1177 = vunpack.c.l.b16 %v538
    %v1178 = vunpack.c.h.b16 %v538
    %v1179 = vunpack.c.l.b16 %v539
    %v1180 = vunpack.c.h.b16 %v539
    %v1181 = vunpack.c.l.b16 %v540
    %v1182 = vunpack.c.h.b16 %v540
    %v1183 = vunpack.c.l.b16 %v541
    %v1184 = vunpack.c.h.b16 %v541
    %v1185 = vunpack.c.l.b16 %v542
    %v1186 = vunpack.c.h.b16 %v542
    %v1187 = vunpack.c.l.b16 %v543
    %v1188 = vunpack.c.h.b16 %v543
    %v1189 = vunpack.c.l.b16 %v544
    %v1190 = vunpack.c.h.b16 %v544
    %v1191 = vunpack.c.l.b16 %v545
    %v1192 = vunpack.c.h.b16 %v545
    %v1193 = vunpack.c.l.b16 %v546
    %v1194 = vunpack.c.h.b16 %v546
    %v1195 = vunpack.c.l.b16 %v547
    %v1196 = vunpack.c.h.b16 %v547
    %v1197 = vunpack.c.l.b16 %v548
    %v1198 = vunpack.c.h.b16 %v548
    %v1199 = vunpack.c.l.b16 %v549
    %v1200 = vunpack.c.h.b16 %v549
    %v1201 = vunpack.c.l.b16 %v550
    %v1202 = vunpack.c.h.b16 %v550
    %v1203 = vunpack.c.l.b16 %v551
    %v1204 = vunpack.c.h.b16 %v551
    %v1205 = vunpack.c.l.b16 %v552
    %v1206 = vunpack.c.h.b16 %v552
    %v1207 = vunpack.c.l.b16 %v553
    %v1208 = vunpack.c.h.b16 %v553
    %v1209 = vunpack.c.l.b16 %v554
    %v1210 = vunpack.c.h.b16 %v554
    %v1211 = vunpack.c.l.b16 %v555
    %v1212 = vunpack.c.h.b16 %v555
    %v1213 = vunpack.c.l.b16 %v556
    %v1214 = vunpack.c.h.b16 %v556
    %v1215 = vunpack.c.l.b16 %v557
    %v1216 = vunpack.c.h.b16 %v557
    %v1217 = vunpack.c.l.b16 %v558
    %v1218 = vunpack.c.h.b16 %v558
    %v1219 = vunpack.c.l.b16 %v559
    %v1220 = vunpack.c.h.b16 %v559
    %v1221 = vunpack.c.l.b16 %v560
    %v1222 = vunpack.c.h.b16 %v560
    %v1223 = vunpack.c.l.b16 %v561
    %v1224 = vunpack.c.h.b16 %v561
    %v1225 = vunpack.c.l.b16 %v562
    %v1226 = vunpack.c.h.b16 %v562
    %v1227 = vunpack.c.l.b16 %v563
    %v1228 = vunpack.c.h.b16 %v563
    %v1229 = vunpack.c.l.b16 %v564
    %v1230 = vunpack.c.h.b16 %v564
    %v1231 = vunpack.c.l.b16 %v565
    %v1232 = vunpack.c.h.b16 %v565
    %v1233 = vunpack.c.l.b16 %v566
    %v1234 = vunpack.c.h.b16 %v566
    %v1235 = vunpack.c.l.b16 %v567
    %v1236 = vunpack.c.h.b16 %v567
    %v1237 = vunpack.c.l.b16 %v568
    %v1238 = vunpack.c.h.b16 %v568
    %v1239 = vunpack.c.l.b16 %v569
    %v1240 = vunpack.c.h.b16 %v569
    %v1241 = vunpack.c.l.b16 %v570
    %v1242 = vunpack.c.h.b16 %v570
    %v1243 = vunpack.c.l.b16 %v571
    %v1244 = vunpack.c.h.b16 %v571
    %v1245 = vunpack.c.l.b16 %v572
    %v1246 = vunpack.c.h.b16 %v572
    %v1247 = vunpack.c.l.b16 %v573
    %v1248 = vunpack.c.h.b16 %v573
    %v1249 = vunpack.c.l.b16 %v574
    %v1250 = vunpack.c.h.b16 %v574
    %v1251 = vunpack.c.l.b16 %v575
    %v1252 = vunpack.c.h.b16 %v575
    %v1253 = vunpack.c.l.b16 %v576
    %v1254 = vunpack.c.h.b16 %v576
    %v1255 = vunpack.c.l.b16 %v577
    %v1256 = vunpack.c.h.b16 %v577
    %v1257 = vunpack.c.l.b16 %v578
    %v1258 = vunpack.c.h.b16 %v578
    %v1259 = vunpack.c.l.b16 %v579
    %v1260 = vunpack.c.h.b16 %v579
    %v1261 = vunpack.c.l.b16 %v580
    %v1262 = vunpack.c.h.b16 %v580
    %v1263 = vunpack.c.l.b16 %v581
    %v1264 = vunpack.c.h.b16 %v581
    %v1265 = vunpack.c.l.b16 %v582
    %v1266 = vunpack.c.h.b16 %v582
    %v1267 = vunpack.c.l.b16 %v583
    %v1268 = vunpack.c.h.b16 %v583
    %v1269 = vunpack.c.l.b16 %v584
    %v1270 = vunpack.c.h.b16 %v584
    %v1271 = vunpack.c.l.b16 %v585
    %v1272 = vunpack.c.h.b16 %v585
    %v1273 = vunpack.c.l.b16 %v586
    %v1274 = vunpack.c.h.b16 %v586
    %v1275 = vunpack.c.l.b16 %v587
    %v1276 = vunpack.c.h.b16 %v587
    %v1277 = vunpack.c.l.b16 %v588
    %v1278 = vunpack.c.h.b16 %v588
    %v1279 = vunpack.c.l.b16 %v589
    %v1280 = vunpack.c.h.b16 %v589
    %v1281 = vunpack.c.l.b16 %v590
    %v1282 = vunpack.c.h.b16 %v590
    %v1283 = vunpack.c.l.b16 %v591
    %v1284 = vunpack.c.h.b16 %v591
    %v1285 = vunpack.c.l.b16 %v592
    %v1286 = vunpack.c.h.b16 %v592
    %v1287 = vunpack.c.l.b16 %v593
    %v1288 = vunpack.c.h.b16 %v593
    %v1289 = vunpack.c.l.b16 %v594
    %v1290 = vunpack.c.h.b16 %v594
    %v1291 = vunpack.c.l.b16 %v595
    %v1292 = vunpack.c.h.b16 %v595
    %v1293 = vunpack.c.l.b16 %v596
    %v1294 = vunpack.c.h.b16 %v596
    %v1295 = vunpack.c.l.b16 %v597
    %v1296 = vunpack.c.h.b16 %v597
    %v1297 = vunpack.c.l.b16 %v598
    %v1298 = vunpack.c.h.b16 %v598
    %v1299 = vunpack.c.l.b16 %v599
    %v1300 = vunpack.c.h.b16 %v599
    %v1301 = vunpack.c.l.b16 %v600
    %v1302 = vunpack.c.h.b16 %v600
    %v1303 = vunpack.c.l.b16 %v601
    %v1304 = vunpack.c.h.b16 %v601
    %v1305 = vunpack.c.l.b16 %v602
    %v1306 = vunpack.c.h.b16 %v602
    %v1307 = vunpack.c.l.b16 %v603
    %v1308 = vunpack.c.h.b16 %v603
    %v1309 = vunpack.c.l.b16 %v604
    %v1310 = vunpack.c.h.b16 %v604
    %v1311 = vunpack.c.l.b16 %v605
    %v1312 = vunpack.c.h.b16 %v605
    %v1313 = vunpack.c.l.b16 %v606
    %v1314 = vunpack.c.h.b16 %v606
    %v1315 = vunpack.c.l.b16 %v607
    %v1316 = vunpack.c.h.b16 %v607
    %v1317 = vunpack.c.l.b16 %v608
    %v1318 = vunpack.c.h.b16 %v608
    %v1319 = vunpack.c.l.b16 %v609
    %v1320 = vunpack.c.h.b16 %v609
    %v1321 = vunpack.c.l.b16 %v610
    %v1322 = vunpack.c.h.b16 %v610
    %v1323 = vunpack.c.l.b16 %v611
    %v1324 = vunpack.c.h.b16 %v611
    %v1325 = vunpack.c.l.b16 %v612
    %v1326 = vunpack.c.h.b16 %v612
    %v1327 = vunpack.c.l.b16 %v613
    %v1328 = vunpack.c.h.b16 %v613
    %v1329 = vunpack.c.l.b16 %v614
    %v1330 = vunpack.c.h.b16 %v614
    %v1331 = vunpack.c.l.b16 %v615
    %v1332 = vunpack.c.h.b16 %v615
    %v1333 = vunpack.c.l.b16 %v616
    %v1334 = vunpack.c.h.b16 %v616
    %v1335 = vunpack.c.l.b16 %v617
    %v1336 = vunpack.c.h.b16 %v617
    %v1337 = vunpack.c.l.b16 %v618
    %v1338 = vunpack.c.h.b16 %v618
    %v1339 = vunpack.c.l.b16 %v619
    %v1340 = vunpack.c.h.b16 %v619
    %v1341 = vunpack.c.l.b16 %v620
    %v1342 = vunpack.c.h.b16 %v620
    %v1343 = vunpack.c.l.b16 %v621
    %v1344 = vunpack.c.h.b16 %v621
    %v1345 = vunpack.c.l.b16 %v622
    %v1346 = vunpack.c.h.b16 %v622
    %v1347 = vunpack.c.l.b16 %v623
    %v1348 = vunpack.c.h.b16 %v623
    %v1349 = vunpack.c.l.b16 %v624
    %v1350 = vunpack.c.h.b16 %v624
    %v1351 = vunpack.c.l.b16 %v625
    %v1352 = vunpack.c.h.b16 %v625
    %v1353 = vunpack.c.l.b16 %v626
    %v1354 = vunpack.c.h.b16 %v626
    %v1355 = vunpack.c.l.b16 %v627
    %v1356 = vunpack.c.h.b16 %v627
    %v1357 = vunpack.c.l.b16 %v628
    %v1358 = vunpack.c.h.b16 %v628
    %v1359 = vunpack.c.l.b16 %v629
    %v1360 = vunpack.c.h.b16 %v629
    %v1361 = vunpack.c.l.b16 %v630
    %v1362 = vunpack.c.h.b16 %v630
    %v1363 = vunpack.c.l.b16 %v631
    %v1364 = vunpack.c.h.b16 %v631
    %v1365 = vunpack.c.l.b16 %v632
    %v1366 = vunpack.c.h.b16 %v632
    %v1367 = vunpack.c.l.b16 %v633
    %v1368 = vunpack.c.h.b16 %v633
    %v1369 = vunpack.c.l.b16 %v634
    %v1370 = vunpack.c.h.b16 %v634
    %v1371 = vunpack.c.l.b16 %v635
    %v1372 = vunpack.c.h.b16 %v635
    %v1373 = vunpack.c.l.b16 %v636
    %v1374 = vunpack.c.h.b16 %v636
    %v1375 = vunpack.c.l.b16 %v637
    %v1376 = vunpack.c.h.b16 %v637
    %v1377 = vunpack.c.l.b16 %v638
    %v1378 = vunpack.c.h.b16 %v638
    %v1379 = vunpack.c.l.b16 %v639
    %v1380 = vunpack.c.h.b16 %v639
    %v1381 = vunpack.c.l.b16 %v640
    %v1382 = vunpack.c.h.b16 %v640
    %v1383 = vunpack.c.l.b16 %v641
    %v1384 = vunpack.c.h.b16 %v641
    %v1385 = vunpack.c.l.b16 %v642
    %v1386 = vunpack.c.h.b16 %v642
    %v1387 = vunpack.c.l.b16 %v643
    %v1388 = vunpack.c.h.b16 %v643
    %v1389 = vunpack.c.l.b16 %v644
    %v1390 = vunpack.c.h.b16 %v644
    %v1391 = vunpack.c.l.b16 %v645
    %v1392 = vunpack.c.h.b16 %v645
    %v1393 = vunpack.c.l.b16 %v646
    %v1394 = vunpack.c.h.b16 %v646
    %v1395 = vunpack.c.l.b16 %v647
    %v1396 = vunpack.c.h.b16 %v647
    %v1397 = vunpack.c.l.b16 %v648
    %v1398 = vunpack.c.h.b16 %v648
    %v1399 = vunpack.c.l.b16 %v649
    %v1400 = vunpack.c.h.b16 %v649
    %v1401 = vunpack.c.l.b16 %v650
    %v1402 = vunpack.c.h.b16 %v650
    %v1403 = vunpack.c.l.b16 %v651
    %v1404 = vunpack.c.h.b16 %v651
    %v1405 = vunpack.c.l.b16 %v652
    %v1406 = vunpack.c.h.b16 %v652
    %v1407 = vunpack.c.l.b16 %v653
    %v1408 = vunpack.c.h.b16 %v653
    %v1409 = vunpack.c.l.b16 %v654
    %v1410 = vunpack.c.h.b16 %v654
    %v1411 = vunpack.c.l.b16 %v655
    %v1412 = vunpack.c.h.b16 %v655
    %v1413 = vunpack.c.l.b16 %v656
    %v1414 = vunpack.c.h.b16 %v656
    %v1415 = vunpack.c.l.b16 %v657
    %v1416 = vunpack.c.h.b16 %v657
    %v1417 = vunpack.c.l.b16 %v658
    %v1418 = vunpack.c.h.b16 %v658
    %v1419 = vunpack.c.l.b16 %v659
    %v1420 = vunpack.c.h.b16 %v659
    %v1421 = vunpack.c.l.b16 %v660
    %v1422 = vunpack.c.h.b16 %v660
    %v1423 = vunpack.c.l.b16 %v661
    %v1424 = vunpack.c.h.b16 %v661
    %v1425 = vunpack.c.l.b16 %v662
    %v1426 = vunpack.c.h.b16 %v662
    %v1427 = vunpack.c.l.b16 %v663
    %v1428 = vunpack.c.h.b16 %v663
    %v1429 = vunpack.c.l.b16 %v664
    %v1430 = vunpack.c.h.b16 %v664
    %v1431 = vunpack.c.l.b16 %v665
    %v1432 = vunpack.c.h.b16 %v665
    %v1433 = vunpack.c.l.b16 %v666
    %v1434 = vunpack.c.h.b16 %v666
    %v1435 = vunpack.c.l.b16 %v667
    %v1436 = vunpack.c.h.b16 %v667
    %v1437 = vunpack.c.l.b16 %v668
    %v1438 = vunpack.c.h.b16 %v668
    %v1439 = vunpack.c.l.b16 %v669
    %v1440 = vunpack.c.h.b16 %v669
    %v1441 = vunpack.c.l.b16 %v670
    %v1442 = vunpack.c.h.b16 %v670
    %v1443 = vunpack.c.l.b16 %v671
    %v1444 = vunpack.c.h.b16 %v671
    %v1445 = vunpack.c.l.b16 %v672
    %v1446 = vunpack.c.h.b16 %v672
    %v1447 = vunpack.c.l.b16 %v673
    %v1448 = vunpack.c.h.b16 %v673
    %v1449 = vunpack.c.l.b16 %v674
    %v1450 = vunpack.c.h.b16 %v674
    %v1451 = vunpack.c.l.b16 %v675
    %v1452 = vunpack.c.h.b16 %v675
    %v1453 = vunpack.c.l.b16 %v676
    %v1454 = vunpack.c.h.b16 %v676
    %v1455 = vunpack.c.l.b16 %v677
    %v1456 = vunpack.c.h.b16 %v677
    %v1457 = vunpack.c.l.b16 %v678
    %v1458 = vunpack.c.h.b16 %v678
    %v1459 = vunpack.c.l.b16 %v679
    %v1460 = vunpack.c.h.b16 %v679
    %v1461 = vunpack.c.l.b16 %v680
    %v1462 = vunpack.c.h.b16 %v680
    %v1463 = vunpack.c.l.b16 %v681
    %v1464 = vunpack.c.h.b16 %v681
    %v1465 = vunpack.c.l.b16 %v682
    %v1466 = vunpack.c.h.b16 %v682
    %v1467 = vunpack.c.l.b16 %v683
    %v1468 = vunpack.c.h.b16 %v683
    %v1469 = vunpack.c.l.b16 %v684
    %v1470 = vunpack.c.h.b16 %v684
    %v1471 = vunpack.c.l.b16 %v685
    %v1472 = vunpack.c.h.b16 %v685
    %v1473 = vunpack.c.l.b16 %v686
    %v1474 = vunpack.c.h.b16 %v686
    %v1475 = vunpack.c.l.b16 %v687
    %v1476 = vunpack.c.h.b16 %v687
    %v1477 = vunpack.c.l.b16 %v688
    %v1478 = vunpack.c.h.b16 %v688
    %v1479 = vpack.c.b16 %v971, %v967
    %v1480 = vpack.c.b16 %v972, %v968
    %v1481 = vpack.c.b16 %v973, %v969
    %v1482 = vpack.c.b16 %v974, %v970
    %v1483 = vpack.c.b16 %v979, %v975
    %v1484 = vpack.c.b16 %v980, %v976
    %v1485 = vpack.c.b16 %v981, %v977
    %v1486 = vpack.c.b16 %v982, %v978
    %v1487 = vpack.c.b16 %v987, %v983
    %v1488 = vpack.c.b16 %v988, %v984
    %v1489 = vpack.c.b16 %v989, %v985
    %v1490 = vpack.c.b16 %v990, %v986
    %v1491 = vpack.c.b16 %v995, %v991
    %v1492 = vpack.c.b16 %v996, %v992
    %v1493 = vpack.c.b16 %v997, %v993
    %v1494 = vpack.c.b16 %v998, %v994
    %v1495 = vpack.c.b16 %v1003, %v999
    %v1496 = vpack.c.b16 %v1004, %v1000
    %v1497 = vpack.c.b16 %v1005, %v1001
    %v1498 = vpack.c.b16 %v1006, %v1002
    %v1499 = vpack.c.b16 %v1011, %v1007
    %v1500 = vpack.c.b16 %v1012, %v1008
    %v1501 = vpack.c.b16 %v1013, %v1009
    %v1502 = vpack.c.b16 %v1014, %v1010
    %v1503 = vpack.c.b16 %v1019, %v1015
    %v1504 = vpack.c.b16 %v1020, %v1016
    %v1505 = vpack.c.b16 %v1021, %v1017
    %v1506 = vpack.c.b16 %v1022, %v1018
    %v1507 = vpack.c.b16 %v1027, %v1023
    %v1508 = vpack.c.b16 %v1028, %v1024
    %v1509 = vpack.c.b16 %v1029, %v1025
    %v1510 = vpack.c.b16 %v1030, %v1026
    %v1511 = vpack.c.b16 %v1035, %v1031
    %v1512 = vpack.c.b16 %v1036, %v1032
    %v1513 = vpack.c.b16 %v1037, %v1033
    %v1514 = vpack.c.b16 %v1038, %v1034
    %v1515 = vpack.c.b16 %v1043, %v1039
    %v1516 = vpack.c.b16 %v1044, %v1040
    %v1517 = vpack.c.b16 %v1045, %v1041
    %v1518 = vpack.c.b16 %v1046, %v1042
    %v1519 = vpack.c.b16 %v1051, %v1047
    %v1520 = vpack.c.b16 %v1052, %v1048
    %v1521 = vpack.c.b16 %v1053, %v1049
    %v1522 = vpack.c.b16 %v1054, %v1050
    %v1523 = vpack.c.b16 %v1059, %v1055
    %v1524 = vpack.c.b16 %v1060, %v1056
    %v1525 = vpack.c.b16 %v1061, %v1057
    %v1526 = vpack.c.b16 %v1062, %v1058
    %v1527 = vpack.c.b16 %v1067, %v1063
    %v1528 = vpack.c.b16 %v1068, %v1064
    %v1529 = vpack.c.b16 %v1069, %v1065
    %v1530 = vpack.c.b16 %v1070, %v1066
    %v1531 = vpack.c.b16 %v1075, %v1071
    %v1532 = vpack.c.b16 %v1076, %v1072
    %v1533 = vpack.c.b16 %v1077, %v1073
    %v1534 = vpack.c.b16 %v1078, %v1074
    %v1535 = vpack.c.b16 %v1083, %v1079
    %v1536 = vpack.c.b16 %v1084, %v1080
    %v1537 = vpack.c.b16 %v1085, %v1081
    %v1538 = vpack.c.b16 %v1086, %v1082
    %v1539 = vpack.c.b16 %v1091, %v1087
    %v1540 = vpack.c.b16 %v1092, %v1088
    %v1541 = vpack.c.b16 %v1093, %v1089
    %v1542 = vpack.c.b16 %v1094, %v1090
    %v1543 = vpack.c.b16 %v1099, %v1095
    %v1544 = vpack.c.b16 %v1100, %v1096
    %v1545 = vpack.c.b16 %v1101, %v1097
    %v1546 = vpack.c.b16 %v1102, %v1098
    %v1547 = vpack.c.b16 %v1107, %v1103
    %v1548 = vpack.c.b16 %v1108, %v1104
    %v1549 = vpack.c.b16 %v1109, %v1105
    %v1550 = vpack.c.b16 %v1110, %v1106
    %v1551 = vpack.c.b16 %v1115, %v1111
    %v1552 = vpack.c.b16 %v1116, %v1112
    %v1553 = vpack.c.b16 %v1117, %v1113
    %v1554 = vpack.c.b16 %v1118, %v1114
    %v1555 = vpack.c.b16 %v1123, %v1119
    %v1556 = vpack.c.b16 %v1124, %v1120
    %v1557 = vpack.c.b16 %v1125, %v1121
    %v1558 = vpack.c.b16 %v1126, %v1122
    %v1559 = vpack.c.b16 %v1131, %v1127
    %v1560 = vpack.c.b16 %v1132, %v1128
    %v1561 = vpack.c.b16 %v1133, %v1129
    %v1562 = vpack.c.b16 %v1134, %v1130
    %v1563 = vpack.c.b16 %v1139, %v1135
    %v1564 = vpack.c.b16 %v1140, %v1136
    %v1565 = vpack.c.b16 %v1141, %v1137
    %v1566 = vpack.c.b16 %v1142, %v1138
    %v1567 = vpack.c.b16 %v1147, %v1143
    %v1568 = vpack.c.b16 %v1148, %v1144
    %v1569 = vpack.c.b16 %v1149, %v1145
    %v1570 = vpack.c.b16 %v1150, %v1146
    %v1571 = vpack.c.b16 %v1155, %v1151
    %v1572 = vpack.c.b16 %v1156, %v1152
    %v1573 = vpack.c.b16 %v1157, %v1153
    %v1574 = vpack.c.b16 %v1158, %v1154
    %v1575 = vpack.c.b16 %v1163, %v1159
    %v1576 = vpack.c.b16 %v1164, %v1160
    %v1577 = vpack.c.b16 %v1165, %v1161
    %v1578 = vpack.c.b16 %v1166, %v1162
    %v1579 = vpack.c.b16 %v1171, %v1167
    %v1580 = vpack.c.b16 %v1172, %v1168
    %v1581 = vpack.c.b16 %v1173, %v1169
    %v1582 = vpack.c.b16 %v1174, %v1170
    %v1583 = vpack.c.b16 %v1179, %v1175
    %v1584 = vpack.c.b16 %v1180, %v1176
    %v1585 = vpack.c.b16 %v1181, %v1177
    %v1586 = vpack.c.b16 %v1182, %v1178
    %v1587 = vpack.c.b16 %v1187, %v1183
    %v1588 = vpack.c.b16 %v1188, %v1184
    %v1589 = vpack.c.b16 %v1189, %v1185
    %v1590 = vpack.c.b16 %v1190, %v1186
    %v1591 = vpack.c.b16 %v1195, %v1191
    %v1592 = vpack.c.b16 %v1196, %v1192
    %v1593 = vpack.c.b16 %v1197, %v1193
    %v1594 = vpack.c.b16 %v1198, %v1194
    %v1595 = vpack.c.b16 %v1203, %v1199
    %v1596 = vpack.c.b16 %v1204, %v1200
    %v1597 = vpack.c.b16 %v1205, %v1201
    %v1598 = vpack.c.b16 %v1206, %v1202
    %v1599 = vpack.c.b16 %v1211, %v1207
    %v1600 = vpack.c.b16 %v1212, %v1208
    %v1601 = vpack.c.b16 %v1213, %v1209
    %v1602 = vpack.c.b16 %v1214, %v1210
    %v1603 = vpack.c.b16 %v1219, %v1215
    %v1604 = vpack.c.b16 %v1220, %v1216
    %v1605 = vpack.c.b16 %v1221, %v1217
    %v1606 = vpack.c.b16 %v1222, %v1218
    %v1607 = vpack.c.b16 %v1227, %v1223
    %v1608 = vpack.c.b16 %v1228, %v1224
    %v1609 = vpack.c.b16 %v1229, %v1225
    %v1610 = vpack.c.b16 %v1230, %v1226
    %v1611 = vpack.c.b16 %v1235, %v1231
    %v1612 = vpack.c.b16 %v1236, %v1232
    %v1613 = vpack.c.b16 %v1237, %v1233
    %v1614 = vpack.c.b16 %v1238, %v1234
    %v1615 = vpack.c.b16 %v1243, %v1239
    %v1616 = vpack.c.b16 %v1244, %v1240
    %v1617 = vpack.c.b16 %v1245, %v1241
    %v1618 = vpack.c.b16 %v1246, %v1242
    %v1619 = vpack.c.b16 %v1251, %v1247
    %v1620 = vpack.c.b16 %v1252, %v1248
    %v1621 = vpack.c.b16 %v1253, %v1249
    %v1622 = vpack.c.b16 %v1254, %v1250
    %v1623 = vpack.c.b16 %v1259, %v1255
    %v1624 = vpack.c.b16 %v1260, %v1256
    %v1625 = vpack.c.b16 %v1261, %v1257
    %v1626 = vpack.c.b16 %v1262, %v1258
    %v1627 = vpack.c.b16 %v1267, %v1263
    %v1628 = vpack.c.b16 %v1268, %v1264
    %v1629 = vpack.c.b16 %v1269, %v1265
    %v1630 = vpack.c.b16 %v1270, %v1266
    %v1631 = vpack.c.b16 %v1275, %v1271
    %v1632 = vpack.c.b16 %v1276, %v1272
    %v1633 = vpack.c.b16 %v1277, %v1273
    %v1634 = vpack.c.b16 %v1278, %v1274
    %v1635 = vpack.c.b16 %v1283, %v1279
    %v1636 = vpack.c.b16 %v1284, %v1280
    %v1637 = vpack.c.b16 %v1285, %v1281
    %v1638 = vpack.c.b16 %v1286, %v1282
    %v1639 = vpack.c.b16 %v1291, %v1287
    %v1640 = vpack.c.b16 %v1292, %v1288
    %v1641 = vpack.c.b16 %v1293, %v1289
    %v1642 = vpack.c.b16 %v1294, %v1290
    %v1643 = vpack.c.b16 %v1299, %v1295
    %v1644 = vpack.c.b16 %v1300, %v1296
    %v1645 = vpack.c.b16 %v1301, %v1297
    %v1646 = vpack.c.b16 %v1302, %v1298
    %v1647 = vpack.c.b16 %v1307, %v1303
    %v1648 = vpack.c.b16 %v1308, %v1304
    %v1649 = vpack.c.b16 %v1309, %v1305
    %v1650 = vpack.c.b16 %v1310, %v1306
    %v1651 = vpack.c.b16 %v1315, %v1311
    %v1652 = vpack.c.b16 %v1316, %v1312
    %v1653 = vpack.c.b16 %v1317, %v1313
    %v1654 = vpack.c.b16 %v1318, %v1314
    %v1655 = vpack.c.b16 %v1323, %v1319
    %v1656 = vpack.c.b16 %v1324, %v1320
    %v1657 = vpack.c.b16 %v1325, %v1321
    %v1658 = vpack.c.b16 %v1326, %v1322
    %v1659 = vpack.c.b16 %v1331, %v1327
    %v1660 = vpack.c.b16 %v1332, %v1328
    %v1661 = vpack.c.b16 %v1333, %v1329
    %v1662 = vpack.c.b16 %v1334, %v1330
    %v1663 = vpack.c.b16 %v1339, %v1335
    %v1664 = vpack.c.b16 %v1340, %v1336
    %v1665 = vpack.c.b16 %v1341, %v1337
    %v1666 = vpack.c.b16 %v1342, %v1338
    %v1667 = vpack.c.b16 %v1347, %v1343
    %v1668 = vpack.c.b16 %v1348, %v1344
    %v1669 = vpack.c.b16 %v1349, %v1345
    %v1670 = vpack.c.b16 %v1350, %v1346
    %v1671 = vpack.c.b16 %v1355, %v1351
    %v1672 = vpack.c.b16 %v1356, %v1352
    %v1673 = vpack.c.b16 %v1357, %v1353
    %v1674 = vpack.c.b16 %v1358, %v1354
    %v1675 = vpack.c.b16 %v1363, %v1359
    %v1676 = vpack.c.b16 %v1364, %v1360
    %v1677 = vpack.c.b16 %v1365, %v1361
    %v1678 = vpack.c.b16 %v1366, %v1362
    %v1679 = vpack.c.b16 %v1371, %v1367
    %v1680 = vpack.c.b16 %v1372, %v1368
    %v1681 = vpack.c.b16 %v1373, %v1369
    %v1682 = vpack.c.b16 %v1374, %v1370
    %v1683 = vpack.c.b16 %v1379, %v1375
    %v1684 = vpack.c.b16 %v1380, %v1376
    %v1685 = vpack.c.b16 %v1381, %v1377
    %v1686 = vpack.c.b16 %v1382, %v1378
    %v1687 = vpack.c.b16 %v1387, %v1383
    %v1688 = vpack.c.b16 %v1388, %v1384
    %v1689 = vpack.c.b16 %v1389, %v1385
    %v1690 = vpack.c.b16 %v1390, %v1386
    %v1691 = vpack.c.b16 %v1395, %v1391
    %v1692 = vpack.c.b16 %v1396, %v1392
    %v1693 = vpack.c.b16 %v1397, %v1393
    %v1694 = vpack.c.b16 %v1398, %v1394
    %v1695 = vpack.c.b16 %v1403, %v1399
    %v1696 = vpack.c.b16 %v1404, %v1400
    %v1697 = vpack.c.b16 %v1405, %v1401
    %v1698 = vpack.c.b16 %v1406, %v1402
    %v1699 = vpack.c.b16 %v1411, %v1407
    %v1700 = vpack.c.b16 %v1412, %v1408
    %v1701 = vpack.c.b16 %v1413, %v1409
    %v1702 = vpack.c.b16 %v1414, %v1410
    %v1703 = vpack.c.b16 %v1419, %v1415
    %v1704 = vpack.c.b16 %v1420, %v1416
    %v1705 = vpack.c.b16 %v1421, %v1417
    %v1706 = vpack.c.b16 %v1422, %v1418
    %v1707 = vpack.c.b16 %v1427, %v1423
    %v1708 = vpack.c.b16 %v1428, %v1424
    %v1709 = vpack.c.b16 %v1429, %v1425
    %v1710 = vpack.c.b16 %v1430, %v1426
    %v1711 = vpack.c.b16 %v1435, %v1431
    %v1712 = vpack.c.b16 %v1436, %v1432
    %v1713 = vpack.c.b16 %v1437, %v1433
    %v1714 = vpack.c.b16 %v1438, %v1434
    %v1715 = vpack.c.b16 %v1443, %v1439
    %v1716 = vpack.c.b16 %v1444, %v1440
    %v1717 = vpack.c.b16 %v1445, %v1441
    %v1718 = vpack.c.b16 %v1446, %v1442
    %v1719 = vpack.c.b16 %v1451, %v1447
    %v1720 = vpack.c.b16 %v1452, %v1448
    %v1721 = vpack.c.b16 %v1453, %v1449
    %v1722 = vpack.c.b16 %v1454, %v1450
    %v1723 = vpack.c.b16 %v1459, %v1455
    %v1724 = vpack.c.b16 %v1460, %v1456
    %v1725 = vpack.c.b16 %v1461, %v1457
    %v1726 = vpack.c.b16 %v1462, %v1458
    %v1727 = vpack.c.b16 %v1467, %v1463
    %v1728 = vpack.c.b16 %v1468, %v1464
    %v1729 = vpack.c.b16 %v1469, %v1465
    %v1730 = vpack.c.b16 %v1470, %v1466
    %v1731 = vpack.c.b16 %v1475, %v1471
    %v1732 = vpack.c.b16 %v1476, %v1472
    %v1733 = vpack.c.b16 %v1477, %v1473
    %v1734 = vpack.c.b16 %v1478, %v1474
    %1991 = vmatprep.subr.bf16.mxu0 %v1508
    %1992 = vmatpush1.bf16.msra.mxu0 %v1507
    %1993 = vmatprep.subr.bf16.mxu0 %v1504
    %1994 = vmatpush1.bf16.msra.mxu0 %v1503
    %1995 = vmatprep.subr.bf16.mxu0 %v1500
    %1996 = vmatpush1.bf16.msra.mxu0 %v1499
    %1997 = vmatprep.subr.bf16.mxu0 %v1496
    %1998 = vmatpush1.bf16.msra.mxu0 %v1495
    %1999 = vmatprep.subr.bf16.mxu0 %v1492
    %2000 = vmatpush1.bf16.msra.mxu0 %v1491
    %2001 = vmatprep.subr.bf16.mxu0 %v1488
    %2002 = vmatpush1.bf16.msra.mxu0 %v1487
    %2003 = vmatprep.subr.bf16.mxu0 %v1484
    %2004 = vmatpush1.bf16.msra.mxu0 %v1483
    %2005 = vmatprep.subr.bf16.mxu0 %v1480
    %2006 = vmatpush1.bf16.msra.mxu0 %v1479
    %2007 = vmatprep.subr.bf16.mxu0 %v1540
    %2008 = vmatpush2.bf16.msra.mxu0 %v1539
    %2009 = vmatprep.subr.bf16.mxu0 %v1536
    %2010 = vmatpush2.bf16.msra.mxu0 %v1535
    %2011 = vmatprep.subr.bf16.mxu0 %v1532
    %2012 = vmatpush2.bf16.msra.mxu0 %v1531
    %2013 = vmatprep.subr.bf16.mxu0 %v1528
    %2014 = vmatpush2.bf16.msra.mxu0 %v1527
    %2015 = vmatprep.subr.bf16.mxu0 %v1524
    %2016 = vmatpush2.bf16.msra.mxu0 %v1523
    %2017 = vmatprep.subr.bf16.mxu0 %v1520
    %2018 = vmatpush2.bf16.msra.mxu0 %v1519
    %2019 = vmatprep.subr.bf16.mxu0 %v1516
    %2020 = vmatpush2.bf16.msra.mxu0 %v1515
    %2021 = vmatprep.subr.bf16.mxu0 %v1512
    %2022 = vmatpush2.bf16.msra.mxu0 %v1511
    %2023 = vmatprep.mubr.bf16.mxu0 %v426
    %2024 = vmatmul.mubr.bf16.gmra.mxu0 %v425
    %v2025 = vpop.f32.mrf.mxu0
    %v2026 = vadd.f32 %v694, %v2025
    %v2027 = vpop.f32.mrf.mxu0
    %v2028 = vadd.f32 %v698, %v2027
    %v2029 = vpop.f32.mrf.mxu0
    %v2030 = vadd.f32 %v694, %v2029
    %v2031 = vpop.f32.mrf.mxu0
    %v2032 = vadd.f32 %v698, %v2031
    %2033 = vdwg.mxu0
    %2034 = vmatprep.subr.bf16.mxu0 %v1572
    %2035 = vmatpush1.bf16.msra.mxu0 %v1571
    %2036 = vmatprep.subr.bf16.mxu0 %v1568
    %2037 = vmatpush1.bf16.msra.mxu0 %v1567
    %2038 = vmatprep.subr.bf16.mxu0 %v1564
    %2039 = vmatpush1.bf16.msra.mxu0 %v1563
    %2040 = vmatprep.subr.bf16.mxu0 %v1560
    %2041 = vmatpush1.bf16.msra.mxu0 %v1559
    %2042 = vmatprep.subr.bf16.mxu0 %v1556
    %2043 = vmatpush1.bf16.msra.mxu0 %v1555
    %2044 = vmatprep.subr.bf16.mxu0 %v1552
    %2045 = vmatpush1.bf16.msra.mxu0 %v1551
    %2046 = vmatprep.subr.bf16.mxu0 %v1548
    %2047 = vmatpush1.bf16.msra.mxu0 %v1547
    %2048 = vmatprep.subr.bf16.mxu0 %v1544
    %2049 = vmatpush1.bf16.msra.mxu0 %v1543
    %2050 = vmatprep.subr.bf16.mxu0 %v1604
    %2051 = vmatpush2.bf16.msra.mxu0 %v1603
    %2052 = vmatprep.subr.bf16.mxu0 %v1600
    %2053 = vmatpush2.bf16.msra.mxu0 %v1599
    %2054 = vmatprep.subr.bf16.mxu0 %v1596
    %2055 = vmatpush2.bf16.msra.mxu0 %v1595
    %2056 = vmatprep.subr.bf16.mxu0 %v1592
    %2057 = vmatpush2.bf16.msra.mxu0 %v1591
    %2058 = vmatprep.subr.bf16.mxu0 %v1588
    %2059 = vmatpush2.bf16.msra.mxu0 %v1587
    %2060 = vmatprep.subr.bf16.mxu0 %v1584
    %2061 = vmatpush2.bf16.msra.mxu0 %v1583
    %2062 = vmatprep.subr.bf16.mxu0 %v1580
    %2063 = vmatpush2.bf16.msra.mxu0 %v1579
    %2064 = vmatprep.subr.bf16.mxu0 %v1576
    %2065 = vmatpush2.bf16.msra.mxu0 %v1575
    %2066 = vmatprep.mubr.bf16.mxu0 %v428
    %2067 = vmatmul.mubr.bf16.gmra.mxu0 %v427
    %v2068 = vpop.f32.mrf.mxu0
    %v2069 = vadd.f32 %v2026, %v2068
    %v2070 = vpop.f32.mrf.mxu0
    %v2071 = vadd.f32 %v2028, %v2070
    %v2072 = vpop.f32.mrf.mxu0
    %v2073 = vadd.f32 %v2030, %v2072
    %v2074 = vpop.f32.mrf.mxu0
    %v2075 = vadd.f32 %v2032, %v2074
    %2076 = vdwg.mxu0
    %2077 = vmatprep.subr.bf16.mxu0 %v1636
    %2078 = vmatpush1.bf16.msra.mxu0 %v1635
    %2079 = vmatprep.subr.bf16.mxu0 %v1632
    %2080 = vmatpush1.bf16.msra.mxu0 %v1631
    %2081 = vmatprep.subr.bf16.mxu0 %v1628
    %2082 = vmatpush1.bf16.msra.mxu0 %v1627
    %2083 = vmatprep.subr.bf16.mxu0 %v1624
    %2084 = vmatpush1.bf16.msra.mxu0 %v1623
    %2085 = vmatprep.subr.bf16.mxu0 %v1620
    %2086 = vmatpush1.bf16.msra.mxu0 %v1619
    %2087 = vmatprep.subr.bf16.mxu0 %v1616
    %2088 = vmatpush1.bf16.msra.mxu0 %v1615
    %2089 = vmatprep.subr.bf16.mxu0 %v1612
    %2090 = vmatpush1.bf16.msra.mxu0 %v1611
    %2091 = vmatprep.subr.bf16.mxu0 %v1608
    %2092 = vmatpush1.bf16.msra.mxu0 %v1607
    %2093 = vmatprep.subr.bf16.mxu0 %v1668
    %2094 = vmatpush2.bf16.msra.mxu0 %v1667
    %2095 = vmatprep.subr.bf16.mxu0 %v1664
    %2096 = vmatpush2.bf16.msra.mxu0 %v1663
    %2097 = vmatprep.subr.bf16.mxu0 %v1660
    %2098 = vmatpush2.bf16.msra.mxu0 %v1659
    %2099 = vmatprep.subr.bf16.mxu0 %v1656
    %2100 = vmatpush2.bf16.msra.mxu0 %v1655
    %2101 = vmatprep.subr.bf16.mxu0 %v1652
    %2102 = vmatpush2.bf16.msra.mxu0 %v1651
    %2103 = vmatprep.subr.bf16.mxu0 %v1648
    %2104 = vmatpush2.bf16.msra.mxu0 %v1647
    %2105 = vmatprep.subr.bf16.mxu0 %v1644
    %2106 = vmatpush2.bf16.msra.mxu0 %v1643
    %2107 = vmatprep.subr.bf16.mxu0 %v1640
    %2108 = vmatpush2.bf16.msra.mxu0 %v1639
    %2109 = vmatprep.mubr.bf16.mxu0 %v430
    %2110 = vmatmul.mubr.bf16.gmra.mxu0 %v429
    %v2111 = vpop.f32.mrf.mxu0
    %v2112 = vadd.f32 %v2069, %v2111
    %v2113 = vpop.f32.mrf.mxu0
    %v2114 = vadd.f32 %v2071, %v2113
    %v2115 = vpop.f32.mrf.mxu0
    %v2116 = vadd.f32 %v2073, %v2115
    %v2117 = vpop.f32.mrf.mxu0
    %v2118 = vadd.f32 %v2075, %v2117
    %2119 = vdwg.mxu0
    %2120 = vmatprep.subr.bf16.mxu0 %v1700
    %2121 = vmatpush1.bf16.msra.mxu0 %v1699
    %2122 = vmatprep.subr.bf16.mxu0 %v1696
    %2123 = vmatpush1.bf16.msra.mxu0 %v1695
    %2124 = vmatprep.subr.bf16.mxu0 %v1692
    %2125 = vmatpush1.bf16.msra.mxu0 %v1691
    %2126 = vmatprep.subr.bf16.mxu0 %v1688
    %2127 = vmatpush1.bf16.msra.mxu0 %v1687
    %2128 = vmatprep.subr.bf16.mxu0 %v1684
    %2129 = vmatpush1.bf16.msra.mxu0 %v1683
    %2130 = vmatprep.subr.bf16.mxu0 %v1680
    %2131 = vmatpush1.bf16.msra.mxu0 %v1679
    %2132 = vmatprep.subr.bf16.mxu0 %v1676
    %2133 = vmatpush1.bf16.msra.mxu0 %v1675
    %2134 = vmatprep.subr.bf16.mxu0 %v1672
    %2135 = vmatpush1.bf16.msra.mxu0 %v1671
    %2136 = vmatprep.subr.bf16.mxu0 %v1732
    %2137 = vmatpush2.bf16.msra.mxu0 %v1731
    %2138 = vmatprep.subr.bf16.mxu0 %v1728
    %2139 = vmatpush2.bf16.msra.mxu0 %v1727
    %2140 = vmatprep.subr.bf16.mxu0 %v1724
    %2141 = vmatpush2.bf16.msra.mxu0 %v1723
    %2142 = vmatprep.subr.bf16.mxu0 %v1720
    %2143 = vmatpush2.bf16.msra.mxu0 %v1719
    %2144 = vmatprep.subr.bf16.mxu0 %v1716
    %2145 = vmatpush2.bf16.msra.mxu0 %v1715
    %2146 = vmatprep.subr.bf16.mxu0 %v1712
    %2147 = vmatpush2.bf16.msra.mxu0 %v1711
    %2148 = vmatprep.subr.bf16.mxu0 %v1708
    %2149 = vmatpush2.bf16.msra.mxu0 %v1707
    %2150 = vmatprep.subr.bf16.mxu0 %v1704
    %2151 = vmatpush2.bf16.msra.mxu0 %v1703
    %2152 = vmatprep.mubr.bf16.mxu0 %v432
    %2153 = vmatmul.mubr.bf16.gmra.mxu0 %v431
    %v2154 = vpop.f32.mrf.mxu0
    %v2155 = vadd.f32 %v2112, %v2154
    %v2156 = vpop.f32.mrf.mxu0
    %v2157 = vadd.f32 %v2114, %v2156
    %v2158 = vpop.f32.mrf.mxu0
    %v2159 = vadd.f32 %v2116, %v2158
    %v2160 = vpop.f32.mrf.mxu0
    %v2161 = vadd.f32 %v2118, %v2160
    %2162 = vdwg.mxu0
    %2163 = vmatprep.subr.bf16.mxu0 %v1510
    %2164 = vmatpush1.bf16.msra.mxu0 %v1509
    %2165 = vmatprep.subr.bf16.mxu0 %v1506
    %2166 = vmatpush1.bf16.msra.mxu0 %v1505
    %2167 = vmatprep.subr.bf16.mxu0 %v1502
    %2168 = vmatpush1.bf16.msra.mxu0 %v1501
    %2169 = vmatprep.subr.bf16.mxu0 %v1498
    %2170 = vmatpush1.bf16.msra.mxu0 %v1497
    %2171 = vmatprep.subr.bf16.mxu0 %v1494
    %2172 = vmatpush1.bf16.msra.mxu0 %v1493
    %2173 = vmatprep.subr.bf16.mxu0 %v1490
    %2174 = vmatpush1.bf16.msra.mxu0 %v1489
    %2175 = vmatprep.subr.bf16.mxu0 %v1486
    %2176 = vmatpush1.bf16.msra.mxu0 %v1485
    %2177 = vmatprep.subr.bf16.mxu0 %v1482
    %2178 = vmatpush1.bf16.msra.mxu0 %v1481
    %2179 = vmatprep.subr.bf16.mxu0 %v1542
    %2180 = vmatpush2.bf16.msra.mxu0 %v1541
    %2181 = vmatprep.subr.bf16.mxu0 %v1538
    %2182 = vmatpush2.bf16.msra.mxu0 %v1537
    %2183 = vmatprep.subr.bf16.mxu0 %v1534
    %2184 = vmatpush2.bf16.msra.mxu0 %v1533
    %2185 = vmatprep.subr.bf16.mxu0 %v1530
    %2186 = vmatpush2.bf16.msra.mxu0 %v1529
    %2187 = vmatprep.subr.bf16.mxu0 %v1526
    %2188 = vmatpush2.bf16.msra.mxu0 %v1525
    %2189 = vmatprep.subr.bf16.mxu0 %v1522
    %2190 = vmatpush2.bf16.msra.mxu0 %v1521
    %2191 = vmatprep.subr.bf16.mxu0 %v1518
    %2192 = vmatpush2.bf16.msra.mxu0 %v1517
    %2193 = vmatprep.subr.bf16.mxu0 %v1514
    %2194 = vmatpush2.bf16.msra.mxu0 %v1513
    %2195 = vmatprep.mubr.bf16.mxu0 %v426
    %2196 = vmatmul.mubr.bf16.gmra.mxu0 %v425
    %v2197 = vpop.f32.mrf.mxu0
    %v2198 = vadd.f32 %v702, %v2197
    %v2199 = vpop.f32.mrf.mxu0
    %v2200 = vadd.f32 %v706, %v2199
    %v2201 = vpop.f32.mrf.mxu0
    %v2202 = vadd.f32 %v702, %v2201
    %v2203 = vpop.f32.mrf.mxu0
    %v2204 = vadd.f32 %v706, %v2203
    %2205 = vdwg.mxu0
    %2206 = vmatprep.subr.bf16.mxu0 %v1574
    %2207 = vmatpush1.bf16.msra.mxu0 %v1573
    %2208 = vmatprep.subr.bf16.mxu0 %v1570
    %2209 = vmatpush1.bf16.msra.mxu0 %v1569
    %2210 = vmatprep.subr.bf16.mxu0 %v1566
    %2211 = vmatpush1.bf16.msra.mxu0 %v1565
    %2212 = vmatprep.subr.bf16.mxu0 %v1562
    %2213 = vmatpush1.bf16.msra.mxu0 %v1561
    %2214 = vmatprep.subr.bf16.mxu0 %v1558
    %2215 = vmatpush1.bf16.msra.mxu0 %v1557
    %2216 = vmatprep.subr.bf16.mxu0 %v1554
    %2217 = vmatpush1.bf16.msra.mxu0 %v1553
    %2218 = vmatprep.subr.bf16.mxu0 %v1550
    %2219 = vmatpush1.bf16.msra.mxu0 %v1549
    %2220 = vmatprep.subr.bf16.mxu0 %v1546
    %2221 = vmatpush1.bf16.msra.mxu0 %v1545
    %2222 = vmatprep.subr.bf16.mxu0 %v1606
    %2223 = vmatpush2.bf16.msra.mxu0 %v1605
    %2224 = vmatprep.subr.bf16.mxu0 %v1602
    %2225 = vmatpush2.bf16.msra.mxu0 %v1601
    %2226 = vmatprep.subr.bf16.mxu0 %v1598
    %2227 = vmatpush2.bf16.msra.mxu0 %v1597
    %2228 = vmatprep.subr.bf16.mxu0 %v1594
    %2229 = vmatpush2.bf16.msra.mxu0 %v1593
    %2230 = vmatprep.subr.bf16.mxu0 %v1590
    %2231 = vmatpush2.bf16.msra.mxu0 %v1589
    %2232 = vmatprep.subr.bf16.mxu0 %v1586
    %2233 = vmatpush2.bf16.msra.mxu0 %v1585
    %2234 = vmatprep.subr.bf16.mxu0 %v1582
    %2235 = vmatpush2.bf16.msra.mxu0 %v1581
    %2236 = vmatprep.subr.bf16.mxu0 %v1578
    %2237 = vmatpush2.bf16.msra.mxu0 %v1577
    %2238 = vmatprep.mubr.bf16.mxu0 %v428
    %2239 = vmatmul.mubr.bf16.gmra.mxu0 %v427
    %v2240 = vpop.f32.mrf.mxu0
    %v2241 = vadd.f32 %v2198, %v2240
    %v2242 = vpop.f32.mrf.mxu0
    %v2243 = vadd.f32 %v2200, %v2242
    %v2244 = vpop.f32.mrf.mxu0
    %v2245 = vadd.f32 %v2202, %v2244
    %v2246 = vpop.f32.mrf.mxu0
    %v2247 = vadd.f32 %v2204, %v2246
    %2248 = vdwg.mxu0
    %2249 = vmatprep.subr.bf16.mxu0 %v1638
    %2250 = vmatpush1.bf16.msra.mxu0 %v1637
    %2251 = vmatprep.subr.bf16.mxu0 %v1634
    %2252 = vmatpush1.bf16.msra.mxu0 %v1633
    %2253 = vmatprep.subr.bf16.mxu0 %v1630
    %2254 = vmatpush1.bf16.msra.mxu0 %v1629
    %2255 = vmatprep.subr.bf16.mxu0 %v1626
    %2256 = vmatpush1.bf16.msra.mxu0 %v1625
    %2257 = vmatprep.subr.bf16.mxu0 %v1622
    %2258 = vmatpush1.bf16.msra.mxu0 %v1621
    %2259 = vmatprep.subr.bf16.mxu0 %v1618
    %2260 = vmatpush1.bf16.msra.mxu0 %v1617
    %2261 = vmatprep.subr.bf16.mxu0 %v1614
    %2262 = vmatpush1.bf16.msra.mxu0 %v1613
    %2263 = vmatprep.subr.bf16.mxu0 %v1610
    %2264 = vmatpush1.bf16.msra.mxu0 %v1609
    %2265 = vmatprep.subr.bf16.mxu0 %v1670
    %2266 = vmatpush2.bf16.msra.mxu0 %v1669
    %2267 = vmatprep.subr.bf16.mxu0 %v1666
    %2268 = vmatpush2.bf16.msra.mxu0 %v1665
    %2269 = vmatprep.subr.bf16.mxu0 %v1662
    %2270 = vmatpush2.bf16.msra.mxu0 %v1661
    %2271 = vmatprep.subr.bf16.mxu0 %v1658
    %2272 = vmatpush2.bf16.msra.mxu0 %v1657
    %2273 = vmatprep.subr.bf16.mxu0 %v1654
    %2274 = vmatpush2.bf16.msra.mxu0 %v1653
    %2275 = vmatprep.subr.bf16.mxu0 %v1650
    %2276 = vmatpush2.bf16.msra.mxu0 %v1649
    %2277 = vmatprep.subr.bf16.mxu0 %v1646
    %2278 = vmatpush2.bf16.msra.mxu0 %v1645
    %2279 = vmatprep.subr.bf16.mxu0 %v1642
    %2280 = vmatpush2.bf16.msra.mxu0 %v1641
    %2281 = vmatprep.mubr.bf16.mxu0 %v430
    %2282 = vmatmul.mubr.bf16.gmra.mxu0 %v429
    %v2283 = vpop.f32.mrf.mxu0
    %v2284 = vadd.f32 %v2241, %v2283
    %v2285 = vpop.f32.mrf.mxu0
    %v2286 = vadd.f32 %v2243, %v2285
    %v2287 = vpop.f32.mrf.mxu0
    %v2288 = vadd.f32 %v2245, %v2287
    %v2289 = vpop.f32.mrf.mxu0
    %v2290 = vadd.f32 %v2247, %v2289
    %2291 = vdwg.mxu0
    %2292 = vmatprep.subr.bf16.mxu0 %v1702
    %2293 = vmatpush1.bf16.msra.mxu0 %v1701
    %2294 = vmatprep.subr.bf16.mxu0 %v1698
    %2295 = vmatpush1.bf16.msra.mxu0 %v1697
    %2296 = vmatprep.subr.bf16.mxu0 %v1694
    %2297 = vmatpush1.bf16.msra.mxu0 %v1693
    %2298 = vmatprep.subr.bf16.mxu0 %v1690
    %2299 = vmatpush1.bf16.msra.mxu0 %v1689
    %2300 = vmatprep.subr.bf16.mxu0 %v1686
    %2301 = vmatpush1.bf16.msra.mxu0 %v1685
    %2302 = vmatprep.subr.bf16.mxu0 %v1682
    %2303 = vmatpush1.bf16.msra.mxu0 %v1681
    %2304 = vmatprep.subr.bf16.mxu0 %v1678
    %2305 = vmatpush1.bf16.msra.mxu0 %v1677
    %2306 = vmatprep.subr.bf16.mxu0 %v1674
    %2307 = vmatpush1.bf16.msra.mxu0 %v1673
    %2308 = vmatprep.subr.bf16.mxu0 %v1734
    %2309 = vmatpush2.bf16.msra.mxu0 %v1733
    %2310 = vmatprep.subr.bf16.mxu0 %v1730
    %2311 = vmatpush2.bf16.msra.mxu0 %v1729
    %2312 = vmatprep.subr.bf16.mxu0 %v1726
    %2313 = vmatpush2.bf16.msra.mxu0 %v1725
    %2314 = vmatprep.subr.bf16.mxu0 %v1722
    %2315 = vmatpush2.bf16.msra.mxu0 %v1721
    %2316 = vmatprep.subr.bf16.mxu0 %v1718
    %2317 = vmatpush2.bf16.msra.mxu0 %v1717
    %2318 = vmatprep.subr.bf16.mxu0 %v1714
    %2319 = vmatpush2.bf16.msra.mxu0 %v1713
    %2320 = vmatprep.subr.bf16.mxu0 %v1710
    %2321 = vmatpush2.bf16.msra.mxu0 %v1709
    %2322 = vmatprep.subr.bf16.mxu0 %v1706
    %2323 = vmatpush2.bf16.msra.mxu0 %v1705
    %2324 = vmatprep.mubr.bf16.mxu0 %v432
    %2325 = vmatmul.mubr.bf16.gmra.mxu0 %v431
    %v2326 = vpop.f32.mrf.mxu0
    %v2327 = vadd.f32 %v2284, %v2326
    %v2328 = vpop.f32.mrf.mxu0
    %v2329 = vadd.f32 %v2286, %v2328
    %v2330 = vpop.f32.mrf.mxu0
    %v2331 = vadd.f32 %v2288, %v2330
    %v2332 = vpop.f32.mrf.mxu0
    %v2333 = vadd.f32 %v2290, %v2332
    %2334 = vdwg.mxu0
    %v2335 = vmax.f32 %v2155, 0.0
    %v2336 = vmax.f32 %v2157, 0.0
    %v2337 = vmax.f32 %v2327, 0.0
    %v2338 = vmax.f32 %v2329, 0.0
    %v2339 = vmax.f32 %v2159, 0.0
    %v2340 = vmax.f32 %v2161, 0.0
    %v2341 = vmax.f32 %v2331, 0.0
    %v2342 = vmax.f32 %v2333, 0.0
    %v2343 = vpack.c.bf16 %v2339, %v2335
    %v2344 = vpack.c.bf16 %v2340, %v2336
    %v2345 = vpack.c.bf16 %v2341, %v2337
    %v2346 = vpack.c.bf16 %v2342, %v2338
    %v2347 = vld [vmem:[#allocation6] sm:$0xff]
    %v2348 = vld [vmem:[#allocation6 + $0x8] sm:$0xff]
    %v2349 = vld [vmem:[#allocation6 + $0x10] sm:$0xff]
    %v2350 = vld [vmem:[#allocation6 + $0x18] sm:$0xff]
    %v2351 = vld [vmem:[#allocation6 + $0x20] sm:$0xff]
    %v2352 = vld [vmem:[#allocation6 + $0x28] sm:$0xff]
    %v2353 = vld [vmem:[#allocation6 + $0x30] sm:$0xff]
    %v2354 = vld [vmem:[#allocation6 + $0x38] sm:$0xff]
    %v2355 = vld [vmem:[#allocation6 + $0x40] sm:$0xff]
    %v2356 = vld [vmem:[#allocation6 + $0x48] sm:$0xff]
    %v2357 = vld [vmem:[#allocation6 + $0x50] sm:$0xff]
    %v2358 = vld [vmem:[#allocation6 + $0x58] sm:$0xff]
    %v2359 = vld [vmem:[#allocation6 + $0x60] sm:$0xff]
    %v2360 = vld [vmem:[#allocation6 + $0x68] sm:$0xff]
    %v2361 = vld [vmem:[#allocation6 + $0x70] sm:$0xff]
    %v2362 = vld [vmem:[#allocation6 + $0x78] sm:$0xff]
    %v2363 = vld [vmem:[#allocation6 + $0x80] sm:$0xff]
    %v2364 = vld [vmem:[#allocation6 + $0x88] sm:$0xff]
    %v2365 = vld [vmem:[#allocation6 + $0x90] sm:$0xff]
    %v2366 = vld [vmem:[#allocation6 + $0x98] sm:$0xff]
    %v2367 = vld [vmem:[#allocation6 + $0xa0] sm:$0xff]
    %v2368 = vld [vmem:[#allocation6 + $0xa8] sm:$0xff]
    %v2369 = vld [vmem:[#allocation6 + $0xb0] sm:$0xff]
    %v2370 = vld [vmem:[#allocation6 + $0xb8] sm:$0xff]
    %v2371 = vld [vmem:[#allocation6 + $0xc0] sm:$0xff]
    %v2372 = vld [vmem:[#allocation6 + $0xc8] sm:$0xff]
    %v2373 = vld [vmem:[#allocation6 + $0xd0] sm:$0xff]
    %v2374 = vld [vmem:[#allocation6 + $0xd8] sm:$0xff]
    %v2375 = vld [vmem:[#allocation6 + $0xe0] sm:$0xff]
    %v2376 = vld [vmem:[#allocation6 + $0xe8] sm:$0xff]
    %v2377 = vld [vmem:[#allocation6 + $0xf0] sm:$0xff]
    %v2378 = vld [vmem:[#allocation6 + $0xf8] sm:$0xff]
    %v2379 = vld [vmem:[#allocation6 + $0x100] sm:$0xff]
    %v2380 = vld [vmem:[#allocation6 + $0x108] sm:$0xff]
    %v2381 = vld [vmem:[#allocation6 + $0x110] sm:$0xff]
    %v2382 = vld [vmem:[#allocation6 + $0x118] sm:$0xff]
    %v2383 = vld [vmem:[#allocation6 + $0x120] sm:$0xff]
    %v2384 = vld [vmem:[#allocation6 + $0x128] sm:$0xff]
    %v2385 = vld [vmem:[#allocation6 + $0x130] sm:$0xff]
    %v2386 = vld [vmem:[#allocation6 + $0x138] sm:$0xff]
    %v2387 = vld [vmem:[#allocation6 + $0x140] sm:$0xff]
    %v2388 = vld [vmem:[#allocation6 + $0x148] sm:$0xff]
    %v2389 = vld [vmem:[#allocation6 + $0x150] sm:$0xff]
    %v2390 = vld [vmem:[#allocation6 + $0x158] sm:$0xff]
    %v2391 = vld [vmem:[#allocation6 + $0x160] sm:$0xff]
    %v2392 = vld [vmem:[#allocation6 + $0x168] sm:$0xff]
    %v2393 = vld [vmem:[#allocation6 + $0x170] sm:$0xff]
    %v2394 = vld [vmem:[#allocation6 + $0x178] sm:$0xff]
    %v2395 = vld [vmem:[#allocation6 + $0x180] sm:$0xff]
    %v2396 = vld [vmem:[#allocation6 + $0x188] sm:$0xff]
    %v2397 = vld [vmem:[#allocation6 + $0x190] sm:$0xff]
    %v2398 = vld [vmem:[#allocation6 + $0x198] sm:$0xff]
    %v2399 = vld [vmem:[#allocation6 + $0x1a0] sm:$0xff]
    %v2400 = vld [vmem:[#allocation6 + $0x1a8] sm:$0xff]
    %v2401 = vld [vmem:[#allocation6 + $0x1b0] sm:$0xff]
    %v2402 = vld [vmem:[#allocation6 + $0x1b8] sm:$0xff]
    %v2403 = vld [vmem:[#allocation6 + $0x1c0] sm:$0xff]
    %v2404 = vld [vmem:[#allocation6 + $0x1c8] sm:$0xff]
    %v2405 = vld [vmem:[#allocation6 + $0x1d0] sm:$0xff]
    %v2406 = vld [vmem:[#allocation6 + $0x1d8] sm:$0xff]
    %v2407 = vld [vmem:[#allocation6 + $0x1e0] sm:$0xff]
    %v2408 = vld [vmem:[#allocation6 + $0x1e8] sm:$0xff]
    %v2409 = vld [vmem:[#allocation6 + $0x1f0] sm:$0xff]
    %v2410 = vld [vmem:[#allocation6 + $0x1f8] sm:$0xff]
    %v2411 = vld [vmem:[%s6] sm:$0x3]
    %v2413 = vlaneseq
    %v2414 = vshrl.u32 %v2413, 7
    %v2415 = vsub.s32 0, %v2414
    %v2416 = vrot.slane %v2411, %v2415
    %v2417 = vlaneseq
    %v2418 = vshrl.u32 %v2417, 7
    %v2419 = vsub.s32 1, %v2418
    %v2420 = vrot.slane %v2411, %v2419
    %v2487 = vunpack.c.l.b16 %v2347
    %v2488 = vunpack.c.h.b16 %v2347
    %v2489 = vunpack.c.l.b16 %v2348
    %v2490 = vunpack.c.h.b16 %v2348
    %v2491 = vunpack.c.l.b16 %v2349
    %v2492 = vunpack.c.h.b16 %v2349
    %v2493 = vunpack.c.l.b16 %v2350
    %v2494 = vunpack.c.h.b16 %v2350
    %v2495 = vunpack.c.l.b16 %v2351
    %v2496 = vunpack.c.h.b16 %v2351
    %v2497 = vunpack.c.l.b16 %v2352
    %v2498 = vunpack.c.h.b16 %v2352
    %v2499 = vunpack.c.l.b16 %v2353
    %v2500 = vunpack.c.h.b16 %v2353
    %v2501 = vunpack.c.l.b16 %v2354
    %v2502 = vunpack.c.h.b16 %v2354
    %v2503 = vunpack.c.l.b16 %v2355
    %v2504 = vunpack.c.h.b16 %v2355
    %v2505 = vunpack.c.l.b16 %v2356
    %v2506 = vunpack.c.h.b16 %v2356
    %v2507 = vunpack.c.l.b16 %v2357
    %v2508 = vunpack.c.h.b16 %v2357
    %v2509 = vunpack.c.l.b16 %v2358
    %v2510 = vunpack.c.h.b16 %v2358
    %v2511 = vunpack.c.l.b16 %v2359
    %v2512 = vunpack.c.h.b16 %v2359
    %v2513 = vunpack.c.l.b16 %v2360
    %v2514 = vunpack.c.h.b16 %v2360
    %v2515 = vunpack.c.l.b16 %v2361
    %v2516 = vunpack.c.h.b16 %v2361
    %v2517 = vunpack.c.l.b16 %v2362
    %v2518 = vunpack.c.h.b16 %v2362
    %v2519 = vunpack.c.l.b16 %v2363
    %v2520 = vunpack.c.h.b16 %v2363
    %v2521 = vunpack.c.l.b16 %v2364
    %v2522 = vunpack.c.h.b16 %v2364
    %v2523 = vunpack.c.l.b16 %v2365
    %v2524 = vunpack.c.h.b16 %v2365
    %v2525 = vunpack.c.l.b16 %v2366
    %v2526 = vunpack.c.h.b16 %v2366
    %v2527 = vunpack.c.l.b16 %v2367
    %v2528 = vunpack.c.h.b16 %v2367
    %v2529 = vunpack.c.l.b16 %v2368
    %v2530 = vunpack.c.h.b16 %v2368
    %v2531 = vunpack.c.l.b16 %v2369
    %v2532 = vunpack.c.h.b16 %v2369
    %v2533 = vunpack.c.l.b16 %v2370
    %v2534 = vunpack.c.h.b16 %v2370
    %v2535 = vunpack.c.l.b16 %v2371
    %v2536 = vunpack.c.h.b16 %v2371
    %v2537 = vunpack.c.l.b16 %v2372
    %v2538 = vunpack.c.h.b16 %v2372
    %v2539 = vunpack.c.l.b16 %v2373
    %v2540 = vunpack.c.h.b16 %v2373
    %v2541 = vunpack.c.l.b16 %v2374
    %v2542 = vunpack.c.h.b16 %v2374
    %v2543 = vunpack.c.l.b16 %v2375
    %v2544 = vunpack.c.h.b16 %v2375
    %v2545 = vunpack.c.l.b16 %v2376
    %v2546 = vunpack.c.h.b16 %v2376
    %v2547 = vunpack.c.l.b16 %v2377
    %v2548 = vunpack.c.h.b16 %v2377
    %v2549 = vunpack.c.l.b16 %v2378
    %v2550 = vunpack.c.h.b16 %v2378
    %v2551 = vunpack.c.l.b16 %v2379
    %v2552 = vunpack.c.h.b16 %v2379
    %v2553 = vunpack.c.l.b16 %v2380
    %v2554 = vunpack.c.h.b16 %v2380
    %v2555 = vunpack.c.l.b16 %v2381
    %v2556 = vunpack.c.h.b16 %v2381
    %v2557 = vunpack.c.l.b16 %v2382
    %v2558 = vunpack.c.h.b16 %v2382
    %v2559 = vunpack.c.l.b16 %v2383
    %v2560 = vunpack.c.h.b16 %v2383
    %v2561 = vunpack.c.l.b16 %v2384
    %v2562 = vunpack.c.h.b16 %v2384
    %v2563 = vunpack.c.l.b16 %v2385
    %v2564 = vunpack.c.h.b16 %v2385
    %v2565 = vunpack.c.l.b16 %v2386
    %v2566 = vunpack.c.h.b16 %v2386
    %v2567 = vunpack.c.l.b16 %v2387
    %v2568 = vunpack.c.h.b16 %v2387
    %v2569 = vunpack.c.l.b16 %v2388
    %v2570 = vunpack.c.h.b16 %v2388
    %v2571 = vunpack.c.l.b16 %v2389
    %v2572 = vunpack.c.h.b16 %v2389
    %v2573 = vunpack.c.l.b16 %v2390
    %v2574 = vunpack.c.h.b16 %v2390
    %v2575 = vunpack.c.l.b16 %v2391
    %v2576 = vunpack.c.h.b16 %v2391
    %v2577 = vunpack.c.l.b16 %v2392
    %v2578 = vunpack.c.h.b16 %v2392
    %v2579 = vunpack.c.l.b16 %v2393
    %v2580 = vunpack.c.h.b16 %v2393
    %v2581 = vunpack.c.l.b16 %v2394
    %v2582 = vunpack.c.h.b16 %v2394
    %v2583 = vunpack.c.l.b16 %v2395
    %v2584 = vunpack.c.h.b16 %v2395
    %v2585 = vunpack.c.l.b16 %v2396
    %v2586 = vunpack.c.h.b16 %v2396
    %v2587 = vunpack.c.l.b16 %v2397
    %v2588 = vunpack.c.h.b16 %v2397
    %v2589 = vunpack.c.l.b16 %v2398
    %v2590 = vunpack.c.h.b16 %v2398
    %v2591 = vunpack.c.l.b16 %v2399
    %v2592 = vunpack.c.h.b16 %v2399
    %v2593 = vunpack.c.l.b16 %v2400
    %v2594 = vunpack.c.h.b16 %v2400
    %v2595 = vunpack.c.l.b16 %v2401
    %v2596 = vunpack.c.h.b16 %v2401
    %v2597 = vunpack.c.l.b16 %v2402
    %v2598 = vunpack.c.h.b16 %v2402
    %v2599 = vunpack.c.l.b16 %v2403
    %v2600 = vunpack.c.h.b16 %v2403
    %v2601 = vunpack.c.l.b16 %v2404
    %v2602 = vunpack.c.h.b16 %v2404
    %v2603 = vunpack.c.l.b16 %v2405
    %v2604 = vunpack.c.h.b16 %v2405
    %v2605 = vunpack.c.l.b16 %v2406
    %v2606 = vunpack.c.h.b16 %v2406
    %v2607 = vunpack.c.l.b16 %v2407
    %v2608 = vunpack.c.h.b16 %v2407
    %v2609 = vunpack.c.l.b16 %v2408
    %v2610 = vunpack.c.h.b16 %v2408
    %v2611 = vunpack.c.l.b16 %v2409
    %v2612 = vunpack.c.h.b16 %v2409
    %v2613 = vunpack.c.l.b16 %v2410
    %v2614 = vunpack.c.h.b16 %v2410
    %v2615 = vpack.c.b16 %v2489, %v2487
    %v2616 = vpack.c.b16 %v2490, %v2488
    %v2617 = vpack.c.b16 %v2493, %v2491
    %v2618 = vpack.c.b16 %v2494, %v2492
    %v2619 = vpack.c.b16 %v2497, %v2495
    %v2620 = vpack.c.b16 %v2498, %v2496
    %v2621 = vpack.c.b16 %v2501, %v2499
    %v2622 = vpack.c.b16 %v2502, %v2500
    %v2623 = vpack.c.b16 %v2505, %v2503
    %v2624 = vpack.c.b16 %v2506, %v2504
    %v2625 = vpack.c.b16 %v2509, %v2507
    %v2626 = vpack.c.b16 %v2510, %v2508
    %v2627 = vpack.c.b16 %v2513, %v2511
    %v2628 = vpack.c.b16 %v2514, %v2512
    %v2629 = vpack.c.b16 %v2517, %v2515
    %v2630 = vpack.c.b16 %v2518, %v2516
    %v2631 = vpack.c.b16 %v2521, %v2519
    %v2632 = vpack.c.b16 %v2522, %v2520
    %v2633 = vpack.c.b16 %v2525, %v2523
    %v2634 = vpack.c.b16 %v2526, %v2524
    %v2635 = vpack.c.b16 %v2529, %v2527
    %v2636 = vpack.c.b16 %v2530, %v2528
    %v2637 = vpack.c.b16 %v2533, %v2531
    %v2638 = vpack.c.b16 %v2534, %v2532
    %v2639 = vpack.c.b16 %v2537, %v2535
    %v2640 = vpack.c.b16 %v2538, %v2536
    %v2641 = vpack.c.b16 %v2541, %v2539
    %v2642 = vpack.c.b16 %v2542, %v2540
    %v2643 = vpack.c.b16 %v2545, %v2543
    %v2644 = vpack.c.b16 %v2546, %v2544
    %v2645 = vpack.c.b16 %v2549, %v2547
    %v2646 = vpack.c.b16 %v2550, %v2548
    %v2647 = vpack.c.b16 %v2553, %v2551
    %v2648 = vpack.c.b16 %v2554, %v2552
    %v2649 = vpack.c.b16 %v2557, %v2555
    %v2650 = vpack.c.b16 %v2558, %v2556
    %v2651 = vpack.c.b16 %v2561, %v2559
    %v2652 = vpack.c.b16 %v2562, %v2560
    %v2653 = vpack.c.b16 %v2565, %v2563
    %v2654 = vpack.c.b16 %v2566, %v2564
    %v2655 = vpack.c.b16 %v2569, %v2567
    %v2656 = vpack.c.b16 %v2570, %v2568
    %v2657 = vpack.c.b16 %v2573, %v2571
    %v2658 = vpack.c.b16 %v2574, %v2572
    %v2659 = vpack.c.b16 %v2577, %v2575
    %v2660 = vpack.c.b16 %v2578, %v2576
    %v2661 = vpack.c.b16 %v2581, %v2579
    %v2662 = vpack.c.b16 %v2582, %v2580
    %v2663 = vpack.c.b16 %v2585, %v2583
    %v2664 = vpack.c.b16 %v2586, %v2584
    %v2665 = vpack.c.b16 %v2589, %v2587
    %v2666 = vpack.c.b16 %v2590, %v2588
    %v2667 = vpack.c.b16 %v2593, %v2591
    %v2668 = vpack.c.b16 %v2594, %v2592
    %v2669 = vpack.c.b16 %v2597, %v2595
    %v2670 = vpack.c.b16 %v2598, %v2596
    %v2671 = vpack.c.b16 %v2601, %v2599
    %v2672 = vpack.c.b16 %v2602, %v2600
    %v2673 = vpack.c.b16 %v2605, %v2603
    %v2674 = vpack.c.b16 %v2606, %v2604
    %v2675 = vpack.c.b16 %v2609, %v2607
    %v2676 = vpack.c.b16 %v2610, %v2608
    %v2677 = vpack.c.b16 %v2613, %v2611
    %v2678 = vpack.c.b16 %v2614, %v2612
    %2743 = vmatprep.subr.bf16.mxu0 %v2630
    %2744 = vmatpush1.bf16.msra.mxu0 %v2629
    %2745 = vmatprep.subr.bf16.mxu0 %v2628
    %2746 = vmatpush1.bf16.msra.mxu0 %v2627
    %2747 = vmatprep.subr.bf16.mxu0 %v2626
    %2748 = vmatpush1.bf16.msra.mxu0 %v2625
    %2749 = vmatprep.subr.bf16.mxu0 %v2624
    %2750 = vmatpush1.bf16.msra.mxu0 %v2623
    %2751 = vmatprep.subr.bf16.mxu0 %v2622
    %2752 = vmatpush1.bf16.msra.mxu0 %v2621
    %2753 = vmatprep.subr.bf16.mxu0 %v2620
    %2754 = vmatpush1.bf16.msra.mxu0 %v2619
    %2755 = vmatprep.subr.bf16.mxu0 %v2618
    %2756 = vmatpush1.bf16.msra.mxu0 %v2617
    %2757 = vmatprep.subr.bf16.mxu0 %v2616
    %2758 = vmatpush1.bf16.msra.mxu0 %v2615
    %2759 = vmatprep.subr.bf16.mxu0 %v2646
    %2760 = vmatpush2.bf16.msra.mxu0 %v2645
    %2761 = vmatprep.subr.bf16.mxu0 %v2644
    %2762 = vmatpush2.bf16.msra.mxu0 %v2643
    %2763 = vmatprep.subr.bf16.mxu0 %v2642
    %2764 = vmatpush2.bf16.msra.mxu0 %v2641
    %2765 = vmatprep.subr.bf16.mxu0 %v2640
    %2766 = vmatpush2.bf16.msra.mxu0 %v2639
    %2767 = vmatprep.subr.bf16.mxu0 %v2638
    %2768 = vmatpush2.bf16.msra.mxu0 %v2637
    %2769 = vmatprep.subr.bf16.mxu0 %v2636
    %2770 = vmatpush2.bf16.msra.mxu0 %v2635
    %2771 = vmatprep.subr.bf16.mxu0 %v2634
    %2772 = vmatpush2.bf16.msra.mxu0 %v2633
    %2773 = vmatprep.subr.bf16.mxu0 %v2632
    %2774 = vmatpush2.bf16.msra.mxu0 %v2631
    %2775 = vmatprep.mubr.bf16.mxu0 %v2344
    %2776 = vmatmul.mubr.bf16.gmra.mxu0 %v2343
    %v2777 = vpop.f32.mrf.mxu0
    %v2778 = vadd.f32 %v2416, %v2777
    %v2779 = vpop.f32.mrf.mxu0
    %v2780 = vadd.f32 %v2420, %v2779
    %v2781 = vpop.f32.mrf.mxu0
    %v2782 = vadd.f32 %v2416, %v2781
    %v2783 = vpop.f32.mrf.mxu0
    %v2784 = vadd.f32 %v2420, %v2783
    %2785 = vdwg.mxu0
    %2786 = vmatprep.subr.bf16.mxu0 %v2662
    %2787 = vmatpush1.bf16.msra.mxu0 %v2661
    %2788 = vmatprep.subr.bf16.mxu0 %v2660
    %2789 = vmatpush1.bf16.msra.mxu0 %v2659
    %2790 = vmatprep.subr.bf16.mxu0 %v2658
    %2791 = vmatpush1.bf16.msra.mxu0 %v2657
    %2792 = vmatprep.subr.bf16.mxu0 %v2656
    %2793 = vmatpush1.bf16.msra.mxu0 %v2655
    %2794 = vmatprep.subr.bf16.mxu0 %v2654
    %2795 = vmatpush1.bf16.msra.mxu0 %v2653
    %2796 = vmatprep.subr.bf16.mxu0 %v2652
    %2797 = vmatpush1.bf16.msra.mxu0 %v2651
    %2798 = vmatprep.subr.bf16.mxu0 %v2650
    %2799 = vmatpush1.bf16.msra.mxu0 %v2649
    %2800 = vmatprep.subr.bf16.mxu0 %v2648
    %2801 = vmatpush1.bf16.msra.mxu0 %v2647
    %2802 = vmatprep.subr.bf16.mxu0 %v2678
    %2803 = vmatpush2.bf16.msra.mxu0 %v2677
    %2804 = vmatprep.subr.bf16.mxu0 %v2676
    %2805 = vmatpush2.bf16.msra.mxu0 %v2675
    %2806 = vmatprep.subr.bf16.mxu0 %v2674
    %2807 = vmatpush2.bf16.msra.mxu0 %v2673
    %2808 = vmatprep.subr.bf16.mxu0 %v2672
    %2809 = vmatpush2.bf16.msra.mxu0 %v2671
    %2810 = vmatprep.subr.bf16.mxu0 %v2670
    %2811 = vmatpush2.bf16.msra.mxu0 %v2669
    %2812 = vmatprep.subr.bf16.mxu0 %v2668
    %2813 = vmatpush2.bf16.msra.mxu0 %v2667
    %2814 = vmatprep.subr.bf16.mxu0 %v2666
    %2815 = vmatpush2.bf16.msra.mxu0 %v2665
    %2816 = vmatprep.subr.bf16.mxu0 %v2664
    %2817 = vmatpush2.bf16.msra.mxu0 %v2663
    %2818 = vmatprep.mubr.bf16.mxu0 %v2346
    %2819 = vmatmul.mubr.bf16.gmra.mxu0 %v2345
    %v2820 = vpop.f32.mrf.mxu0
    %v2821 = vadd.f32 %v2778, %v2820
    %v2822 = vpop.f32.mrf.mxu0
    %v2823 = vadd.f32 %v2780, %v2822
    %v2824 = vpop.f32.mrf.mxu0
    %v2825 = vadd.f32 %v2782, %v2824
    %v2826 = vpop.f32.mrf.mxu0
    %v2827 = vadd.f32 %v2784, %v2826
    %2828 = vdwg.mxu0
    %v2829 = vmax.f32 %v2821, 0.0
    %v2830 = vmax.f32 %v2823, 0.0
    %v2831 = vmax.f32 %v2825, 0.0
    %v2832 = vmax.f32 %v2827, 0.0
    %v2833 = vpack.c.bf16 %v2831, %v2829
    %v2834 = vpack.c.bf16 %v2832, %v2830
    %v2835 = vld [vmem:[#allocation7] sm:$0xf]
    %v2836 = vld [vmem:[#allocation7 + $0x4] sm:$0xf]
    %v2837 = vld [vmem:[#allocation7 + $0x8] sm:$0xf]
    %v2838 = vld [vmem:[#allocation7 + $0xc] sm:$0xf]
    %v2839 = vld [vmem:[#allocation7 + $0x10] sm:$0xf]
    %v2840 = vld [vmem:[#allocation7 + $0x14] sm:$0xf]
    %v2841 = vld [vmem:[#allocation7 + $0x18] sm:$0xf]
    %v2842 = vld [vmem:[#allocation7 + $0x1c] sm:$0xf]
    %v2843 = vld [vmem:[#allocation7 + $0x20] sm:$0xf]
    %v2844 = vld [vmem:[#allocation7 + $0x24] sm:$0xf]
    %v2845 = vld [vmem:[#allocation7 + $0x28] sm:$0xf]
    %v2846 = vld [vmem:[#allocation7 + $0x2c] sm:$0xf]
    %v2847 = vld [vmem:[#allocation7 + $0x30] sm:$0xf]
    %v2848 = vld [vmem:[#allocation7 + $0x34] sm:$0xf]
    %v2849 = vld [vmem:[#allocation7 + $0x38] sm:$0xf]
    %v2850 = vld [vmem:[#allocation7 + $0x3c] sm:$0xf]
    %v2851 = vld [vmem:[#allocation7 + $0x40] sm:$0xf]
    %v2852 = vld [vmem:[#allocation7 + $0x44] sm:$0xf]
    %v2853 = vld [vmem:[#allocation7 + $0x48] sm:$0xf]
    %v2854 = vld [vmem:[#allocation7 + $0x4c] sm:$0xf]
    %v2855 = vld [vmem:[#allocation7 + $0x50] sm:$0xf]
    %v2856 = vld [vmem:[#allocation7 + $0x54] sm:$0xf]
    %v2857 = vld [vmem:[#allocation7 + $0x58] sm:$0xf]
    %v2858 = vld [vmem:[#allocation7 + $0x5c] sm:$0xf]
    %v2859 = vld [vmem:[#allocation7 + $0x60] sm:$0xf]
    %v2860 = vld [vmem:[#allocation7 + $0x64] sm:$0xf]
    %v2861 = vld [vmem:[#allocation7 + $0x68] sm:$0xf]
    %v2862 = vld [vmem:[#allocation7 + $0x6c] sm:$0xf]
    %v2863 = vld [vmem:[#allocation7 + $0x70] sm:$0xf]
    %v2864 = vld [vmem:[#allocation7 + $0x74] sm:$0xf]
    %v2865 = vld [vmem:[#allocation7 + $0x78] sm:$0xf]
    %v2866 = vld [vmem:[#allocation7 + $0x7c] sm:$0xf]
    %v2867 = vld [vmem:[%s8] sm:$0x1]
    %v2869 = vlaneseq
    %v2870 = vshrl.u32 %v2869, 7
    %v2871 = vsub.s32 0, %v2870
    %v2872 = vrot.slane %v2867, %v2871
    %v2906 = vunpack.c.l.b16 %v2835
    %v2907 = vunpack.c.l.b16 %v2836
    %v2908 = vunpack.c.l.b16 %v2837
    %v2909 = vunpack.c.l.b16 %v2838
    %v2910 = vunpack.c.l.b16 %v2839
    %v2911 = vunpack.c.l.b16 %v2840
    %v2912 = vunpack.c.l.b16 %v2841
    %v2913 = vunpack.c.l.b16 %v2842
    %v2914 = vunpack.c.l.b16 %v2843
    %v2915 = vunpack.c.l.b16 %v2844
    %v2916 = vunpack.c.l.b16 %v2845
    %v2917 = vunpack.c.l.b16 %v2846
    %v2918 = vunpack.c.l.b16 %v2847
    %v2919 = vunpack.c.l.b16 %v2848
    %v2920 = vunpack.c.l.b16 %v2849
    %v2921 = vunpack.c.l.b16 %v2850
    %v2922 = vunpack.c.l.b16 %v2851
    %v2923 = vunpack.c.l.b16 %v2852
    %v2924 = vunpack.c.l.b16 %v2853
    %v2925 = vunpack.c.l.b16 %v2854
    %v2926 = vunpack.c.l.b16 %v2855
    %v2927 = vunpack.c.l.b16 %v2856
    %v2928 = vunpack.c.l.b16 %v2857
    %v2929 = vunpack.c.l.b16 %v2858
    %v2930 = vunpack.c.l.b16 %v2859
    %v2931 = vunpack.c.l.b16 %v2860
    %v2932 = vunpack.c.l.b16 %v2861
    %v2933 = vunpack.c.l.b16 %v2862
    %v2934 = vunpack.c.l.b16 %v2863
    %v2935 = vunpack.c.l.b16 %v2864
    %v2936 = vunpack.c.l.b16 %v2865
    %v2937 = vunpack.c.l.b16 %v2866
    %v2938 = vpack.c.b16 %v2907, %v2906
    %v2939 = vpack.c.b16 %v2909, %v2908
    %v2940 = vpack.c.b16 %v2911, %v2910
    %v2941 = vpack.c.b16 %v2913, %v2912
    %v2942 = vpack.c.b16 %v2915, %v2914
    %v2943 = vpack.c.b16 %v2917, %v2916
    %v2944 = vpack.c.b16 %v2919, %v2918
    %v2945 = vpack.c.b16 %v2921, %v2920
    %v2946 = vpack.c.b16 %v2923, %v2922
    %v2947 = vpack.c.b16 %v2925, %v2924
    %v2948 = vpack.c.b16 %v2927, %v2926
    %v2949 = vpack.c.b16 %v2929, %v2928
    %v2950 = vpack.c.b16 %v2931, %v2930
    %v2951 = vpack.c.b16 %v2933, %v2932
    %v2952 = vpack.c.b16 %v2935, %v2934
    %v2953 = vpack.c.b16 %v2937, %v2936
    %2970 = vmatprep.subr.bf16.mxu0 0
    %2971 = vmatpush1.bf16.msra.mxu0 %v2945
    %2972 = vmatprep.subr.bf16.mxu0 0
    %2973 = vmatpush1.bf16.msra.mxu0 %v2944
    %2974 = vmatprep.subr.bf16.mxu0 0
    %2975 = vmatpush1.bf16.msra.mxu0 %v2943
    %2976 = vmatprep.subr.bf16.mxu0 0
    %2977 = vmatpush1.bf16.msra.mxu0 %v2942
    %2978 = vmatprep.subr.bf16.mxu0 0
    %2979 = vmatpush1.bf16.msra.mxu0 %v2941
    %2980 = vmatprep.subr.bf16.mxu0 0
    %2981 = vmatpush1.bf16.msra.mxu0 %v2940
    %2982 = vmatprep.subr.bf16.mxu0 0
    %2983 = vmatpush1.bf16.msra.mxu0 %v2939
    %2984 = vmatprep.subr.bf16.mxu0 0
    %2985 = vmatpush1.bf16.msra.mxu0 %v2938
    %2986 = vmatprep.subr.bf16.mxu0 0
    %2987 = vmatpush2.bf16.msra.mxu0 %v2953
    %2988 = vmatprep.subr.bf16.mxu0 0
    %2989 = vmatpush2.bf16.msra.mxu0 %v2952
    %2990 = vmatprep.subr.bf16.mxu0 0
    %2991 = vmatpush2.bf16.msra.mxu0 %v2951
    %2992 = vmatprep.subr.bf16.mxu0 0
    %2993 = vmatpush2.bf16.msra.mxu0 %v2950
    %2994 = vmatprep.subr.bf16.mxu0 0
    %2995 = vmatpush2.bf16.msra.mxu0 %v2949
    %2996 = vmatprep.subr.bf16.mxu0 0
    %2997 = vmatpush2.bf16.msra.mxu0 %v2948
    %2998 = vmatprep.subr.bf16.mxu0 0
    %2999 = vmatpush2.bf16.msra.mxu0 %v2947
    %3000 = vmatprep.subr.bf16.mxu0 0
    %3001 = vmatpush2.bf16.msra.mxu0 %v2946
    %3002 = vmatprep.mubr.bf16.mxu0 %v2834
    %3003 = vmatmul.mubr.bf16.gmra.mxu0 %v2833
    %v3004 = vpop.f32.mrf.mxu0
    %v3005 = vadd.f32 %v2872, %v3004
    %v3006 = vpop.f32.mrf.mxu0
    %v3007 = vpop.f32.mrf.mxu0
    %v3008 = vadd.f32 %v2872, %v3007
    %v3009 = vpop.f32.mrf.mxu0
    %3010 = vdwg.mxu0
    %3011 = vst [vmem:[%s9] sm:$0xff] %v3005
    %3012 = vst [vmem:[%s9 + $0x8] sm:$0xff] %v3008
    // Predicated region
    $region54: #{qnet_forward.1} parent=1 // pred_check
      _
    $region55: #{qnet_forward.1} parent=1 // pred_check_branch
      %3014 = sbr.rel (0) target = $region57
    $region56: #{qnet_forward.1} parent=1 // pred_region
      _
    $region57: #{qnet_forward.1} parent=1 // pred_fallthru
      _
    // Predicated region
    $region58: #{qnet_forward.1} parent=1 // pred_check
      _
    $region59: #{qnet_forward.1} parent=1 // pred_check_branch
      %3016 = sbr.rel (0) target = $region61
    $region60: #{qnet_forward.1} parent=1 // pred_region
      _
    $region61: #{qnet_forward.1} parent=1 // pred_fallthru
      _
    %3017 = vsyncpa [#allocation3], 1
    %3018 = vsyncpa [#allocation5], 1
    %3019 = vsyncpa [#allocation8], 1

</llo_original>
